<compile_context>
chip_gen: v7x
topology: tpu7x:2x2x1
jax: 0.10.0
libtpu: 0.0.40
codegen_flags: <defaults>
</compile_context>

<pallas_src>
import jax
import jax.numpy as jnp
from jax.experimental import pallas as pl
from jax.experimental.pallas import tpu as pltpu


def _round_up(x, m):
    return ((x + m - 1) // m) * m


# ----------------------------- Pallas kernel ------------------------------ #
def _make_kernel(n_cross, n_mlp):
    """Builds the fused GDCNS forward kernel for fixed (static) layer counts."""

    def kernel(x_ref, cwf_ref, cb_ref, *rest):
        # rest = [mlp_w0, mlp_b0, ..., mlp_w{M-1}, mlp_b{M-1},
        #         out_w_row (VMEM), out_b (SMEM), o_ref]
        ow_ref = rest[2 * n_mlp]        # (1, H_last) f32
        ob_ref = rest[2 * n_mlp + 1]    # (1, 1)      f32, SMEM
        o_ref = rest[2 * n_mlp + 2]     # (TB, 1)     f32

        D = x_ref.shape[1]
        x0 = x_ref[...]                 # f32; gate math stays f32
        x = x0

        # GateCrossLayer: x = x0 * (x @ W_i + b_i) * sigmoid(x @ Wg_i) + x
        # W_i and Wg_i fused into one (D, 2D) bf16 weight -> single MXU pass.
        for i in range(n_cross):
            fused = jnp.dot(x.astype(jnp.bfloat16), cwf_ref[i],
                            preferred_element_type=jnp.float32)     # (TB, 2D)
            xw = fused[:, :D]                                        # lane-aligned split
            xg = jax.nn.sigmoid(fused[:, D:])                        # EUP
            x = x0 * (xw + cb_ref[i]) * xg + x                       # VPU, f32

        # MultiLayerPerceptron: [Linear (+ folded eval-BN) + ReLU + Dropout(=id)] * M
        h = x
        for i in range(n_mlp):
            w_ref = rest[2 * i]
            b_ref = rest[2 * i + 1]
            h = jnp.dot(h.astype(jnp.bfloat16), w_ref[...],
                        preferred_element_type=jnp.float32) + b_ref[...]
            h = jnp.maximum(h, 0.0)
            # TODO(synk): Dropout(p=0.5) is identity in eval mode; training-mode
            # stochastic dropout / batch-statistics BN not implemented.

        # Final (H_last -> 1) projection as a lane reduction (frees the MXU,
        # avoids a wasted N=1 matmul pass).
        out = jnp.sum(h * ow_ref[...], axis=-1, keepdims=True) + ob_ref[0, 0]
        o_ref[...] = out

    return kernel


def gdcns_pallas(x_embed, cw, cwg, cb, mws, mbs, bns, bnbs, ow, ob, *, tile_b=512):
    """GDCNS forward (eval mode).

    x_embed   : (B, D) f32 dense embedding output.
    cw, cwg   : (L, D, D) cross-layer weights, pre-transposed to (in, out).
    cb        : (L, 1, D) cross-layer bias.
    mws, mbs  : per-layer MLP weights [(D,H1),(H1,H2),...] / biases [(1,Hi)].
    bns, bnbs : per-layer eval-BatchNorm scale/shift (1,Hi); folded here.
    ow, ob    : final Linear(H_last, 1) weight / bias.
    """
    B, D = x_embed.shape
    n_cross = cw.shape[0]
    n_mlp = len(mws)

    # --- wrapper-side weight preprocessing (layout / folding only) ---
    cw_fused = jnp.concatenate([cw, cwg], axis=-1).astype(jnp.bfloat16)   # (L, D, 2D)
    cb_f = cb.astype(jnp.float32)
    mw_f = [(w * s).astype(jnp.bfloat16) for w, s in zip(mws, bns)]       # fold BN scale
    mb_f = [(b * s + t).astype(jnp.float32)
            for b, s, t in zip(mbs, bns, bnbs)]                           # fold BN shift
    h_last = mws[-1].shape[1]
    ow_row = ow.reshape(1, h_last).astype(jnp.float32)
    ob_s = ob.reshape(1, 1).astype(jnp.float32)

    # --- batch tiling: pad B up to a multiple of the batch tile ---
    tb = min(_round_up(tile_b, 8), _round_up(B, 8))
    Bp = _round_up(B, tb)
    if Bp != B:
        x_embed = jnp.pad(x_embed, ((0, Bp - B), (0, 0)))
    grid = (Bp // tb,)

    def full(a):
        n = a.ndim
        return pl.BlockSpec(a.shape, lambda i, n=n: (0,) * n)

    mlp_args, mlp_specs = [], []
    for w, b in zip(mw_f, mb_f):
        mlp_args += [w, b]
        mlp_specs += [full(w), full(b)]

    out = pl.pallas_call(
        _make_kernel(n_cross, n_mlp),
        out_shape=jax.ShapeDtypeStruct((Bp, 1), jnp.float32),
        grid=grid,
        in_specs=[
            pl.BlockSpec((tb, D), lambda i: (i, 0)),             # x: batch-tiled
            full(cw_fused),                                      # weights: VMEM-resident
            full(cb_f),
            *mlp_specs,
            full(ow_row),
            pl.BlockSpec(memory_space=pltpu.MemorySpace.SMEM),   # scalar output bias
        ],
        out_specs=pl.BlockSpec((tb, 1), lambda i: (i, 0)),
        compiler_params=pltpu.CompilerParams(
            dimension_semantics=("parallel",)),                  # megacore on v7x
    )(x_embed, cw_fused, cb_f, *mlp_args, ow_row, ob_s)

    return out[:B]


# ----------------------------- plain-JAX glue ------------------------------ #
def features_embedding(x_idx, table, offsets, embed_dim):
    # FeaturesEmbedding(concat=True): shared table indexed by (idx + field offset),
    # then fields concatenated along the feature axis.
    B, F = x_idx.shape
    flat_idx = x_idx + offsets[None, :]          # (B, F)
    emb = table[flat_idx]                        # (B, F, E)
    return emb.reshape(B, F * embed_dim)


def gdcns_reference(x_embed, cw, cwg, cb, mws, mbs, bns, bnbs, ow, ob):
    # Full-precision reference matching the PyTorch module semantics (eval mode).
    x0 = x_embed
    x = x0
    for i in range(cw.shape[0]):
        xw = x @ cw[i]
        xg = jax.nn.sigmoid(x @ cwg[i])
        x = x0 * (xw + cb[i]) * xg + x
    h = x
    for w, b, s, t in zip(mws, mbs, bns, bnbs):
        h = h @ w + b
        h = h * s + t
        h = jnp.maximum(h, 0.0)
    return h @ ow + ob[0, 0]


# --------------------------------- main ------------------------------------ #
if __name__ == "__main__":
    # Small, module-consistent shapes.
    field_dims = (10, 20, 30, 40)     # 4 fields
    embed_dim = 32
    F = len(field_dims)
    D = F * embed_dim                 # embed_output_dim = 128
    B = 20                            # exercises batch tiling + padding
    cn_layers = 3
    mlp_layers = (256, 256, 256)      # scaled-down (400, 400, 400), lane-aligned

    key = jax.random.PRNGKey(0)
    keys = jax.random.split(key, 10)

    # --- deterministic parameter init (synthetic, no checkpoint) ---
    total_feats = sum(field_dims)
    table = jax.random.normal(keys[0], (total_feats, embed_dim), jnp.float32) * 0.1
    offsets = jnp.asarray(
        [0] + list(jnp.cumsum(jnp.asarray(field_dims[:-1])).tolist()), jnp.int32)

    c_bound = 1.0 / (D ** 0.5)
    cw = jax.random.uniform(keys[1], (cn_layers, D, D), jnp.float32,
                            -c_bound, c_bound)        # already (in, out)
    cwg = jax.random.uniform(keys[2], (cn_layers, D, D), jnp.float32,
                             -c_bound, c_bound)
    cb = jax.random.uniform(keys[3], (cn_layers, 1, D), jnp.float32, 0.0, 1.0)

    # MLP: per-layer Linear + eval BatchNorm (fresh-init running stats).
    eps = 1e-5
    mws, mbs, bns, bnbs = [], [], [], []
    in_dim = D
    for li, h_dim in enumerate(mlp_layers):
        bound = 1.0 / (in_dim ** 0.5)
        mws.append(jax.random.uniform(jax.random.fold_in(keys[4], li),
                                      (in_dim, h_dim), jnp.float32, -bound, bound))
        mbs.append(jax.random.uniform(jax.random.fold_in(keys[5], li),
                                      (1, h_dim), jnp.float32, -bound, bound))
        bns.append(jnp.full((1, h_dim), 1.0 / (1.0 + eps) ** 0.5, jnp.float32))
        bnbs.append(jnp.zeros((1, h_dim), jnp.float32))
        in_dim = h_dim

    o_bound = 1.0 / (in_dim ** 0.5)
    ow = jax.random.uniform(keys[6], (in_dim, 1), jnp.float32, -o_bound, o_bound)
    ob = jax.random.uniform(keys[7], (1, 1), jnp.float32, -o_bound, o_bound)

    # --- input: categorical feature indices (B, num_fields) ---
    x_idx = jnp.stack(
        [jax.random.randint(jax.random.fold_in(keys[8], i), (B,), 0, fd)
         for i, fd in enumerate(field_dims)], axis=1).astype(jnp.int32)

    x_embed = features_embedding(x_idx, table, offsets, embed_dim)   # (B, D) f32

    out = gdcns_pallas(x_embed, cw, cwg, cb, mws, mbs, bns, bnbs, ow, ob,
                       tile_b=16)     # 2 batch tiles of 16 rows, 12 padded rows
    out = jax.block_until_ready(out)

    ref = gdcns_reference(x_embed, cw, cwg, cb, mws, mbs, bns, bnbs, ow, ob)
    assert out.shape == (B, 1), out.shape
    assert jnp.allclose(out, ref, rtol=2e-2, atol=2e-2), (out, ref)

    print("KERNEL_OK")
</pallas_src>

<mosaic_0001>
module attributes {stable_mosaic.version = 11 : i64} {
  func.func @kernel(%arg0: i32, %arg1: memref<16x128xf32, #tpu.memory_space<vmem>>, %arg2: memref<3x128x256xbf16, #tpu.memory_space<vmem>>, %arg3: memref<3x1x128xf32, #tpu.memory_space<vmem>>, %arg4: memref<128x256xbf16, #tpu.memory_space<vmem>>, %arg5: memref<1x256xf32, #tpu.memory_space<vmem>>, %arg6: memref<256x256xbf16, #tpu.memory_space<vmem>>, %arg7: memref<1x256xf32, #tpu.memory_space<vmem>>, %arg8: memref<256x256xbf16, #tpu.memory_space<vmem>>, %arg9: memref<1x256xf32, #tpu.memory_space<vmem>>, %arg10: memref<1x256xf32, #tpu.memory_space<vmem>>, %arg11: memref<1x1xf32, #tpu.memory_space<smem>>, %arg12: memref<16x1xf32, #tpu.memory_space<vmem>>) attributes {dimension_semantics = [#tpu.dimension_semantics<parallel>], iteration_bounds = array<i64: 2>, scalar_prefetch = 0 : i64, scratch_operands = 0 : i64, tpu.core_type = #tpu.core_type<tc>, window_params = [{transform_indices = @transform_0, window_bounds = array<i64: 16, 128>}, {pipeline_mode = #tpu.pipeline_mode<synchronous>, transform_indices = @transform_1, window_bounds = array<i64: 3, 128, 256>}, {pipeline_mode = #tpu.pipeline_mode<synchronous>, transform_indices = @transform_2, window_bounds = array<i64: 3, 1, 128>}, {pipeline_mode = #tpu.pipeline_mode<synchronous>, transform_indices = @transform_3, window_bounds = array<i64: 128, 256>}, {pipeline_mode = #tpu.pipeline_mode<synchronous>, transform_indices = @transform_4, window_bounds = array<i64: 1, 256>}, {pipeline_mode = #tpu.pipeline_mode<synchronous>, transform_indices = @transform_5, window_bounds = array<i64: 256, 256>}, {pipeline_mode = #tpu.pipeline_mode<synchronous>, transform_indices = @transform_6, window_bounds = array<i64: 1, 256>}, {pipeline_mode = #tpu.pipeline_mode<synchronous>, transform_indices = @transform_7, window_bounds = array<i64: 256, 256>}, {pipeline_mode = #tpu.pipeline_mode<synchronous>, transform_indices = @transform_8, window_bounds = array<i64: 1, 256>}, {pipeline_mode = #tpu.pipeline_mode<synchronous>, transform_indices = @transform_9, window_bounds = array<i64: 1, 256>}, {transform_indices = @transform_10, window_bounds = array<i64: 1, 1>}, {transform_indices = @transform_11, window_bounds = array<i64: 16, 1>}]} {
    %c0 = arith.constant 0 : index
    %c0_0 = arith.constant 0 : index
    %0 = vector.load %arg1[%c0, %c0_0] : memref<16x128xf32, #tpu.memory_space<vmem>>, vector<16x128xf32>
    %1 = arith.truncf %0 : vector<16x128xf32> to vector<16x128xbf16>
    %c0_1 = arith.constant 0 : index
    %c0_2 = arith.constant 0 : index
    %c0_3 = arith.constant 0 : index
    %2 = vector.load %arg2[%c0_1, %c0_2, %c0_3] : memref<3x128x256xbf16, #tpu.memory_space<vmem>>, vector<1x128x256xbf16>
    %3 = vector.shape_cast %2 : vector<1x128x256xbf16> to vector<128x256xbf16>
    %cst = arith.constant dense<0.000000e+00> : vector<16x256xf32>
    %4 = tpu.matmul %1, %3, %cst {dimension_numbers = #tpu.dot_dimension_numbers<[1], [0], [0], [1], [0, 0, 1, 1], [], []>} : vector<16x128xbf16>, vector<128x256xbf16>, vector<16x256xf32> -> vector<16x256xf32>
    %5 = vector.extract_strided_slice %4 {offsets = [0, 0], sizes = [16, 128], strides = [1, 1]} : vector<16x256xf32> to vector<16x128xf32>
    %6 = vector.extract_strided_slice %4 {offsets = [0, 128], sizes = [16, 128], strides = [1, 1]} : vector<16x256xf32> to vector<16x128xf32>
    %7 = arith.negf %6 : vector<16x128xf32>
    %8 = math.exp %7 : vector<16x128xf32>
    %cst_4 = arith.constant 1.000000e+00 : f32
    %9 = vector.broadcast %cst_4 : f32 to vector<16x128xf32>
    %10 = arith.addf %9, %8 : vector<16x128xf32>
    %11 = arith.divf %9, %10 : vector<16x128xf32>
    %c0_5 = arith.constant 0 : index
    %c0_6 = arith.constant 0 : index
    %c0_7 = arith.constant 0 : index
    %12 = vector.load %arg3[%c0_5, %c0_6, %c0_7] : memref<3x1x128xf32, #tpu.memory_space<vmem>>, vector<1x1x128xf32>
    %13 = vector.shape_cast %12 : vector<1x1x128xf32> to vector<1x128xf32>
    %14 = vector.broadcast %13 : vector<1x128xf32> to vector<16x128xf32>
    %15 = arith.addf %5, %14 : vector<16x128xf32>
    %16 = arith.mulf %0, %15 : vector<16x128xf32>
    %17 = arith.mulf %16, %11 : vector<16x128xf32>
    %18 = arith.addf %17, %0 : vector<16x128xf32>
    %19 = arith.truncf %18 : vector<16x128xf32> to vector<16x128xbf16>
    %c1 = arith.constant 1 : index
    %c0_8 = arith.constant 0 : index
    %c0_9 = arith.constant 0 : index
    %20 = vector.load %arg2[%c1, %c0_8, %c0_9] : memref<3x128x256xbf16, #tpu.memory_space<vmem>>, vector<1x128x256xbf16>
    %21 = vector.shape_cast %20 : vector<1x128x256xbf16> to vector<128x256xbf16>
    %cst_10 = arith.constant dense<0.000000e+00> : vector<16x256xf32>
    %22 = tpu.matmul %19, %21, %cst_10 {dimension_numbers = #tpu.dot_dimension_numbers<[1], [0], [0], [1], [0, 0, 1, 1], [], []>} : vector<16x128xbf16>, vector<128x256xbf16>, vector<16x256xf32> -> vector<16x256xf32>
    %23 = vector.extract_strided_slice %22 {offsets = [0, 0], sizes = [16, 128], strides = [1, 1]} : vector<16x256xf32> to vector<16x128xf32>
    %24 = vector.extract_strided_slice %22 {offsets = [0, 128], sizes = [16, 128], strides = [1, 1]} : vector<16x256xf32> to vector<16x128xf32>
    %25 = arith.negf %24 : vector<16x128xf32>
    %26 = math.exp %25 : vector<16x128xf32>
    %cst_11 = arith.constant 1.000000e+00 : f32
    %27 = vector.broadcast %cst_11 : f32 to vector<16x128xf32>
    %28 = arith.addf %27, %26 : vector<16x128xf32>
    %29 = arith.divf %27, %28 : vector<16x128xf32>
    %c1_12 = arith.constant 1 : index
    %c0_13 = arith.constant 0 : index
    %c0_14 = arith.constant 0 : index
    %30 = vector.load %arg3[%c1_12, %c0_13, %c0_14] : memref<3x1x128xf32, #tpu.memory_space<vmem>>, vector<1x1x128xf32>
    %31 = vector.shape_cast %30 : vector<1x1x128xf32> to vector<1x128xf32>
    %32 = vector.broadcast %31 : vector<1x128xf32> to vector<16x128xf32>
    %33 = arith.addf %23, %32 : vector<16x128xf32>
    %34 = arith.mulf %0, %33 : vector<16x128xf32>
    %35 = arith.mulf %34, %29 : vector<16x128xf32>
    %36 = arith.addf %35, %18 : vector<16x128xf32>
    %37 = arith.truncf %36 : vector<16x128xf32> to vector<16x128xbf16>
    %c2 = arith.constant 2 : index
    %c0_15 = arith.constant 0 : index
    %c0_16 = arith.constant 0 : index
    %38 = vector.load %arg2[%c2, %c0_15, %c0_16] : memref<3x128x256xbf16, #tpu.memory_space<vmem>>, vector<1x128x256xbf16>
    %39 = vector.shape_cast %38 : vector<1x128x256xbf16> to vector<128x256xbf16>
    %cst_17 = arith.constant dense<0.000000e+00> : vector<16x256xf32>
    %40 = tpu.matmul %37, %39, %cst_17 {dimension_numbers = #tpu.dot_dimension_numbers<[1], [0], [0], [1], [0, 0, 1, 1], [], []>} : vector<16x128xbf16>, vector<128x256xbf16>, vector<16x256xf32> -> vector<16x256xf32>
    %41 = vector.extract_strided_slice %40 {offsets = [0, 0], sizes = [16, 128], strides = [1, 1]} : vector<16x256xf32> to vector<16x128xf32>
    %42 = vector.extract_strided_slice %40 {offsets = [0, 128], sizes = [16, 128], strides = [1, 1]} : vector<16x256xf32> to vector<16x128xf32>
    %43 = arith.negf %42 : vector<16x128xf32>
    %44 = math.exp %43 : vector<16x128xf32>
    %cst_18 = arith.constant 1.000000e+00 : f32
    %45 = vector.broadcast %cst_18 : f32 to vector<16x128xf32>
    %46 = arith.addf %45, %44 : vector<16x128xf32>
    %47 = arith.divf %45, %46 : vector<16x128xf32>
    %c2_19 = arith.constant 2 : index
    %c0_20 = arith.constant 0 : index
    %c0_21 = arith.constant 0 : index
    %48 = vector.load %arg3[%c2_19, %c0_20, %c0_21] : memref<3x1x128xf32, #tpu.memory_space<vmem>>, vector<1x1x128xf32>
    %49 = vector.shape_cast %48 : vector<1x1x128xf32> to vector<1x128xf32>
    %50 = vector.broadcast %49 : vector<1x128xf32> to vector<16x128xf32>
    %51 = arith.addf %41, %50 : vector<16x128xf32>
    %52 = arith.mulf %0, %51 : vector<16x128xf32>
    %53 = arith.mulf %52, %47 : vector<16x128xf32>
    %54 = arith.addf %53, %36 : vector<16x128xf32>
    %55 = arith.truncf %54 : vector<16x128xf32> to vector<16x128xbf16>
    %c0_22 = arith.constant 0 : index
    %c0_23 = arith.constant 0 : index
    %56 = vector.load %arg4[%c0_22, %c0_23] : memref<128x256xbf16, #tpu.memory_space<vmem>>, vector<128x256xbf16>
    %cst_24 = arith.constant dense<0.000000e+00> : vector<16x256xf32>
    %57 = tpu.matmul %55, %56, %cst_24 {dimension_numbers = #tpu.dot_dimension_numbers<[1], [0], [0], [1], [0, 0, 1, 1], [], []>} : vector<16x128xbf16>, vector<128x256xbf16>, vector<16x256xf32> -> vector<16x256xf32>
    %c0_25 = arith.constant 0 : index
    %c0_26 = arith.constant 0 : index
    %58 = vector.load %arg5[%c0_25, %c0_26] : memref<1x256xf32, #tpu.memory_space<vmem>>, vector<1x256xf32>
    %59 = vector.broadcast %58 : vector<1x256xf32> to vector<16x256xf32>
    %60 = arith.addf %57, %59 : vector<16x256xf32>
    %cst_27 = arith.constant 0.000000e+00 : f32
    %61 = vector.broadcast %cst_27 : f32 to vector<16x256xf32>
    %62 = arith.maximumf %60, %61 : vector<16x256xf32>
    %63 = arith.truncf %62 : vector<16x256xf32> to vector<16x256xbf16>
    %c0_28 = arith.constant 0 : index
    %c0_29 = arith.constant 0 : index
    %64 = vector.load %arg6[%c0_28, %c0_29] : memref<256x256xbf16, #tpu.memory_space<vmem>>, vector<256x256xbf16>
    %cst_30 = arith.constant dense<0.000000e+00> : vector<16x256xf32>
    %65 = tpu.matmul %63, %64, %cst_30 {dimension_numbers = #tpu.dot_dimension_numbers<[1], [0], [0], [1], [0, 0, 1, 1], [], []>} : vector<16x256xbf16>, vector<256x256xbf16>, vector<16x256xf32> -> vector<16x256xf32>
    %c0_31 = arith.constant 0 : index
    %c0_32 = arith.constant 0 : index
    %66 = vector.load %arg7[%c0_31, %c0_32] : memref<1x256xf32, #tpu.memory_space<vmem>>, vector<1x256xf32>
    %67 = vector.broadcast %66 : vector<1x256xf32> to vector<16x256xf32>
    %68 = arith.addf %65, %67 : vector<16x256xf32>
    %cst_33 = arith.constant 0.000000e+00 : f32
    %69 = vector.broadcast %cst_33 : f32 to vector<16x256xf32>
    %70 = arith.maximumf %68, %69 : vector<16x256xf32>
    %71 = arith.truncf %70 : vector<16x256xf32> to vector<16x256xbf16>
    %c0_34 = arith.constant 0 : index
    %c0_35 = arith.constant 0 : index
    %72 = vector.load %arg8[%c0_34, %c0_35] : memref<256x256xbf16, #tpu.memory_space<vmem>>, vector<256x256xbf16>
    %cst_36 = arith.constant dense<0.000000e+00> : vector<16x256xf32>
    %73 = tpu.matmul %71, %72, %cst_36 {dimension_numbers = #tpu.dot_dimension_numbers<[1], [0], [0], [1], [0, 0, 1, 1], [], []>} : vector<16x256xbf16>, vector<256x256xbf16>, vector<16x256xf32> -> vector<16x256xf32>
    %c0_37 = arith.constant 0 : index
    %c0_38 = arith.constant 0 : index
    %74 = vector.load %arg9[%c0_37, %c0_38] : memref<1x256xf32, #tpu.memory_space<vmem>>, vector<1x256xf32>
    %75 = vector.broadcast %74 : vector<1x256xf32> to vector<16x256xf32>
    %76 = arith.addf %73, %75 : vector<16x256xf32>
    %cst_39 = arith.constant 0.000000e+00 : f32
    %77 = vector.broadcast %cst_39 : f32 to vector<16x256xf32>
    %78 = arith.maximumf %76, %77 : vector<16x256xf32>
    %c0_40 = arith.constant 0 : index
    %c0_41 = arith.constant 0 : index
    %79 = vector.load %arg10[%c0_40, %c0_41] : memref<1x256xf32, #tpu.memory_space<vmem>>, vector<1x256xf32>
    %80 = vector.broadcast %79 : vector<1x256xf32> to vector<16x256xf32>
    %81 = arith.mulf %78, %80 : vector<16x256xf32>
    %cst_42 = arith.constant dense<0.000000e+00> : vector<16xf32>
    %82 = vector.multi_reduction <add>, %81, %cst_42 [1] : vector<16x256xf32> to vector<16xf32>
    %83 = vector.shape_cast %82 : vector<16xf32> to vector<16x1xf32>
    %c0_43 = arith.constant 0 : index
    %c0_44 = arith.constant 0 : index
    %84 = memref.load %arg11[%c0_43, %c0_44] : memref<1x1xf32, #tpu.memory_space<smem>>
    %85 = vector.broadcast %84 : f32 to vector<16x1xf32>
    %86 = arith.addf %83, %85 : vector<16x1xf32>
    %c0_45 = arith.constant 0 : index
    %c0_46 = arith.constant 0 : index
    %87 = vector.load %arg12[%c0_45, %c0_46] : memref<16x1xf32, #tpu.memory_space<vmem>>, vector<16x1xf32>
    tpu.vector_store %arg12[%c0_45, %c0_46], %86 {strides = array<i32>} : memref<16x1xf32, #tpu.memory_space<vmem>>, vector<16x1xf32>,
    return
  }
  func.func @transform_0(%arg0: i32) -> (i32, i32) {
    %c0_i32 = arith.constant 0 : i32
    %c0_i32_0 = arith.constant 0 : i32
    return %arg0, %c0_i32 : i32, i32
  }
  func.func @transform_1(%arg0: i32) -> (i32, i32, i32) {
    %c0_i32 = arith.constant 0 : i32
    %c0_i32_0 = arith.constant 0 : i32
    %c0_i32_1 = arith.constant 0 : i32
    %c0_i32_2 = arith.constant 0 : i32
    return %c0_i32, %c0_i32_0, %c0_i32_1 : i32, i32, i32
  }
  func.func @transform_2(%arg0: i32) -> (i32, i32, i32) {
    %c0_i32 = arith.constant 0 : i32
    %c0_i32_0 = arith.constant 0 : i32
    %c0_i32_1 = arith.constant 0 : i32
    %c0_i32_2 = arith.constant 0 : i32
    return %c0_i32, %c0_i32_0, %c0_i32_1 : i32, i32, i32
  }
  func.func @transform_3(%arg0: i32) -> (i32, i32) {
    %c0_i32 = arith.constant 0 : i32
    %c0_i32_0 = arith.constant 0 : i32
    %c0_i32_1 = arith.constant 0 : i32
    return %c0_i32, %c0_i32_0 : i32, i32
  }
  func.func @transform_4(%arg0: i32) -> (i32, i32) {
    %c0_i32 = arith.constant 0 : i32
    %c0_i32_0 = arith.constant 0 : i32
    %c0_i32_1 = arith.constant 0 : i32
    return %c0_i32, %c0_i32_0 : i32, i32
  }
  func.func @transform_5(%arg0: i32) -> (i32, i32) {
    %c0_i32 = arith.constant 0 : i32
    %c0_i32_0 = arith.constant 0 : i32
    %c0_i32_1 = arith.constant 0 : i32
    return %c0_i32, %c0_i32_0 : i32, i32
  }
  func.func @transform_6(%arg0: i32) -> (i32, i32) {
    %c0_i32 = arith.constant 0 : i32
    %c0_i32_0 = arith.constant 0 : i32
    %c0_i32_1 = arith.constant 0 : i32
    return %c0_i32, %c0_i32_0 : i32, i32
  }
  func.func @transform_7(%arg0: i32) -> (i32, i32) {
    %c0_i32 = arith.constant 0 : i32
    %c0_i32_0 = arith.constant 0 : i32
    %c0_i32_1 = arith.constant 0 : i32
    return %c0_i32, %c0_i32_0 : i32, i32
  }
  func.func @transform_8(%arg0: i32) -> (i32, i32) {
    %c0_i32 = arith.constant 0 : i32
    %c0_i32_0 = arith.constant 0 : i32
    %c0_i32_1 = arith.constant 0 : i32
    return %c0_i32, %c0_i32_0 : i32, i32
  }
  func.func @transform_9(%arg0: i32) -> (i32, i32) {
    %c0_i32 = arith.constant 0 : i32
    %c0_i32_0 = arith.constant 0 : i32
    %c0_i32_1 = arith.constant 0 : i32
    return %c0_i32, %c0_i32_0 : i32, i32
  }
  func.func @transform_10(%arg0: i32) -> (i32, i32) {
    %c0_i32 = arith.constant 0 : i32
    %c0_i32_0 = arith.constant 0 : i32
    %c0_i32_1 = arith.constant 0 : i32
    return %c0_i32, %c0_i32_0 : i32, i32
  }
  func.func @transform_11(%arg0: i32) -> (i32, i32) {
    %c0_i32 = arith.constant 0 : i32
    %c0_i32_0 = arith.constant 0 : i32
    return %arg0, %c0_i32 : i32, i32
  }
}

</mosaic_0001>

<llo_original>
// kernel: tpu_custom_call.1
$region0: #{tpu_custom_call.1}
  #allocation0 [shape = 'u32[]', space=smem, size = 0x4, offset = 0x4, fixed_abs, tag = 'smem constant byte address 0x4 - core index']
  #allocation1 [shape = 'u32[144,128]{1,0:T(1,128)}', space=vmem, size = 0x12000, scoped, tag = 'internal scratch']
  #allocation2 [shape = 'f32[1,1]{1,0:T(1,128)S(6)}', space=smem, size = 0x200, scoped, tag = 'scoped memory for tpu_custom_call.1']
  %s0 = inlined_call_operand.hbm [shape: f32[32,128], index: 0, kind: input, shape index: {}]
  %s1 = inlined_call_operand.hbm [shape: bf16[3,128,256], index: 1, kind: input, shape index: {}]
  %s2 = inlined_call_operand.vmem [shape: f32[3,1,128], index: 2, kind: input, shape index: {}]
  %s3 = inlined_call_operand.hbm [shape: bf16[128,256], index: 3, kind: input, shape index: {}]
  %s4 = inlined_call_operand.vmem [shape: f32[1,256], index: 4, kind: input, shape index: {}]
  %s5 = inlined_call_operand.hbm [shape: bf16[256,256], index: 5, kind: input, shape index: {}]
  %s6 = inlined_call_operand.vmem [shape: f32[1,256], index: 6, kind: input, shape index: {}]
  %s7 = inlined_call_operand.hbm [shape: bf16[256,256], index: 7, kind: input, shape index: {}]
  %s8 = inlined_call_operand.vmem [shape: f32[1,256], index: 8, kind: input, shape index: {}]
  %s9 = inlined_call_operand.vmem [shape: f32[1,256], index: 9, kind: input, shape index: {}]
  %s10 = inlined_call_operand.<no memory space> [shape: f32[1,1], index: 10, kind: input, shape index: {}]
  %s11 = inlined_call_operand.vmem [shape: f32[32,1], index: 11, kind: output, shape index: {}]
  %s12 = sld [smem:[#allocation0]]
  $region97: #{tpu_custom_call.1} parent=0
    _
  %s14 = ssub.s32 1, %s12
  %s15 = scalar_select 0, %s14, %s12
  %16 = sst [smem:[#allocation2]] %s10
  $region1: #{tpu_custom_call.1} parent=0
    #allocation3 [shape = 'u8[16384]{0}', space=vmem, size = 0x4000, scoped, tag = 'input window, operand 0']
    #allocation4 [shape = 's32[2]{0}', space=sflag, size = 0x8, scoped, tag = 'scoped memory for tpu_custom_call.1']
    #allocation5 [shape = 'u8[196608]{0}', space=vmem, size = 0x30000, scoped, tag = 'input window, operand 1, single buffered']
    #allocation6 [shape = 's32[1]{0}', space=sflag, size = 0x4, scoped, tag = 'scoped memory for tpu_custom_call.1']
    #allocation7 [shape = 'u8[65536]{0}', space=vmem, size = 0x10000, scoped, tag = 'input window, operand 3, single buffered']
    #allocation8 [shape = 'u8[131072]{0}', space=vmem, size = 0x20000, scoped, tag = 'input window, operand 5, single buffered']
    #allocation9 [shape = 's32[1]{0}', space=sflag, size = 0x4, scoped, tag = 'scoped memory for tpu_custom_call.1']
    #allocation10 [shape = 'u8[131072]{0}', space=vmem, size = 0x20000, scoped, tag = 'input window, operand 7, single buffered']
    %17 = vsyncpa [#allocation4], 0
    %s18 = scalar_lea.sflag [#allocation4], 1
    %19 = vsyncpa %s18, 0
    %20 = vsyncpa [#allocation6], 0
    %21 = vsyncpa [#allocation9], 0
    loop: start=0, step=1, limit=4
    $region2: #{tpu_custom_call.1} parent=1 // loop_pre_header
      _
    $region3: #{tpu_custom_call.1} parent=1 // loop_header
      %s23 = sphi 0, %s27
      %p24 = scmp.ge.s32.totalorder %s23, 4
      %s33 = sphi 0, %s35
      %s36 = sphi 0, %s33
      %s37 = sphi 0, %s36
      %s53 = sphi 0, %s37
      %s57 = sphi 0, %s57
      %s59 = sphi 0, %s57
      %s60 = sphi 0, %s59
      %s74 = sphi 0, %s60
      %s78 = sphi 0, %s78
      %s80 = sphi 0, %s78
      %s81 = sphi 0, %s80
      %s95 = sphi 0, %s81
      %s99 = sphi 0, %s99
      %s101 = sphi 0, %s99
      %s102 = sphi 0, %s101
      %s116 = sphi 0, %s102
      %s120 = sphi 0, %s120
      %s122 = sphi 0, %s120
      %s123 = sphi 0, %s122
      %s137 = sphi 0, %s123
      %s141 = sphi 0, %s141
      %s143 = sphi 0, %s141
      %s144 = sphi 0, %s143
      %s158 = sphi 0, %s144
      %s162 = sphi 0, %s162
      %s164 = sphi 0, %s162
      %s165 = sphi 0, %s164
      %s179 = sphi 0, %s165
      %s183 = sphi 0, %s183
      %s185 = sphi 0, %s183
      %s186 = sphi 0, %s185
      %s200 = sphi 0, %s186
      %s204 = sphi 0, %s204
      %s206 = sphi 0, %s204
      %s207 = sphi 0, %s206
      %s221 = sphi 0, %s207
      %s225 = sphi 0, %s225
      %s227 = sphi 0, %s225
      %s228 = sphi 0, %s227
      %s242 = sphi 0, %s228
      %s246 = sphi 0, %s246
      %s248 = sphi 0, %s246
      %s249 = sphi 0, %s248
      %s263 = sphi 0, %s249
      %s269 = sphi 0, %s271
      %s272 = sphi 0, %s269
      %s273 = sphi 0, %s272
      %s289 = sphi 0, %s273
    $region4: #{tpu_custom_call.1} parent=1 // loop_header_branch
      %26 = sbr.rel (%p24) target = $region8
    $region5: #{tpu_custom_call.1} parent=1 // loop_body
      %s28 = ssub.s32 %s23, 1
      %s29 = ssub.s32 %s23, 2
      %s30 = sadd.s32 %s23, 1
      %s31 = ssub.s32 %s23, %s30
      %p32 = scmp.eq.s32.totalorder %s31, 0
      %s34 = sadd.s32 %s33, 1
      %s35 = scalar_select %p32, %s33, %s34
      %p38 = pneg %p32
      %p39 = scmp.eq.s32.totalorder %s23, 1
      %p40 = por %p38, %p39
      %p41 = scmp.ne.s32.totalorder %s33, %s36
      %p42 = scmp.eq.s32.totalorder %s23, 0
      %p43 = por %p41, %p42
      %p44 = scmp.ne.s32.totalorder %s33, %s36
      %p45 = scmp.eq.s32.totalorder %s28, 1
      %p46 = por %p44, %p45
      %p47 = scmp.ne.s32.totalorder %s36, %s37
      %p48 = scmp.eq.s32.totalorder %s28, 0
      %p49 = por %p47, %p48
      %p50 = scmp.ne.s32.totalorder %s36, %s37
      %p51 = scmp.eq.s32.totalorder %s29, 1
      %p52 = por %p50, %p51
      %p54 = scmp.ne.s32.totalorder %s37, %s53
      %p55 = scmp.eq.s32.totalorder %s29, 0
      %p56 = por %p54, %p55
      %s58 = sadd.s32 %s57, 1
      %p61 = scmp.eq.s32.totalorder %s23, 1
      %p62 = scmp.ne.s32.totalorder %s57, %s59
      %p63 = scmp.eq.s32.totalorder %s23, 0
      %p64 = por %p62, %p63
      %p65 = scmp.ne.s32.totalorder %s57, %s59
      %p66 = scmp.eq.s32.totalorder %s28, 1
      %p67 = por %p65, %p66
      %p68 = scmp.ne.s32.totalorder %s59, %s60
      %p69 = scmp.eq.s32.totalorder %s28, 0
      %p70 = por %p68, %p69
      %p71 = scmp.ne.s32.totalorder %s59, %s60
      %p72 = scmp.eq.s32.totalorder %s29, 1
      %p73 = por %p71, %p72
      %p75 = scmp.ne.s32.totalorder %s60, %s74
      %p76 = scmp.eq.s32.totalorder %s29, 0
      %p77 = por %p75, %p76
      %s79 = sadd.s32 %s78, 1
      %p82 = scmp.eq.s32.totalorder %s23, 1
      %p83 = scmp.ne.s32.totalorder %s78, %s80
      %p84 = scmp.eq.s32.totalorder %s23, 0
      %p85 = por %p83, %p84
      %p86 = scmp.ne.s32.totalorder %s78, %s80
      %p87 = scmp.eq.s32.totalorder %s28, 1
      %p88 = por %p86, %p87
      %p89 = scmp.ne.s32.totalorder %s80, %s81
      %p90 = scmp.eq.s32.totalorder %s28, 0
      %p91 = por %p89, %p90
      %p92 = scmp.ne.s32.totalorder %s80, %s81
      %p93 = scmp.eq.s32.totalorder %s29, 1
      %p94 = por %p92, %p93
      %p96 = scmp.ne.s32.totalorder %s81, %s95
      %p97 = scmp.eq.s32.totalorder %s29, 0
      %p98 = por %p96, %p97
      %s100 = sadd.s32 %s99, 1
      %p103 = scmp.eq.s32.totalorder %s23, 1
      %p104 = scmp.ne.s32.totalorder %s99, %s101
      %p105 = scmp.eq.s32.totalorder %s23, 0
      %p106 = por %p104, %p105
      %p107 = scmp.ne.s32.totalorder %s99, %s101
      %p108 = scmp.eq.s32.totalorder %s28, 1
      %p109 = por %p107, %p108
      %p110 = scmp.ne.s32.totalorder %s101, %s102
      %p111 = scmp.eq.s32.totalorder %s28, 0
      %p112 = por %p110, %p111
      %p113 = scmp.ne.s32.totalorder %s101, %s102
      %p114 = scmp.eq.s32.totalorder %s29, 1
      %p115 = por %p113, %p114
      %p117 = scmp.ne.s32.totalorder %s102, %s116
      %p118 = scmp.eq.s32.totalorder %s29, 0
      %p119 = por %p117, %p118
      %s121 = sadd.s32 %s120, 1
      %p124 = scmp.eq.s32.totalorder %s23, 1
      %p125 = scmp.ne.s32.totalorder %s120, %s122
      %p126 = scmp.eq.s32.totalorder %s23, 0
      %p127 = por %p125, %p126
      %p128 = scmp.ne.s32.totalorder %s120, %s122
      %p129 = scmp.eq.s32.totalorder %s28, 1
      %p130 = por %p128, %p129
      %p131 = scmp.ne.s32.totalorder %s122, %s123
      %p132 = scmp.eq.s32.totalorder %s28, 0
      %p133 = por %p131, %p132
      %p134 = scmp.ne.s32.totalorder %s122, %s123
      %p135 = scmp.eq.s32.totalorder %s29, 1
      %p136 = por %p134, %p135
      %p138 = scmp.ne.s32.totalorder %s123, %s137
      %p139 = scmp.eq.s32.totalorder %s29, 0
      %p140 = por %p138, %p139
      %s142 = sadd.s32 %s141, 1
      %p145 = scmp.eq.s32.totalorder %s23, 1
      %p146 = scmp.ne.s32.totalorder %s141, %s143
      %p147 = scmp.eq.s32.totalorder %s23, 0
      %p148 = por %p146, %p147
      %p149 = scmp.ne.s32.totalorder %s141, %s143
      %p150 = scmp.eq.s32.totalorder %s28, 1
      %p151 = por %p149, %p150
      %p152 = scmp.ne.s32.totalorder %s143, %s144
      %p153 = scmp.eq.s32.totalorder %s28, 0
      %p154 = por %p152, %p153
      %p155 = scmp.ne.s32.totalorder %s143, %s144
      %p156 = scmp.eq.s32.totalorder %s29, 1
      %p157 = por %p155, %p156
      %p159 = scmp.ne.s32.totalorder %s144, %s158
      %p160 = scmp.eq.s32.totalorder %s29, 0
      %p161 = por %p159, %p160
      %s163 = sadd.s32 %s162, 1
      %p166 = scmp.eq.s32.totalorder %s23, 1
      %p167 = scmp.ne.s32.totalorder %s162, %s164
      %p168 = scmp.eq.s32.totalorder %s23, 0
      %p169 = por %p167, %p168
      %p170 = scmp.ne.s32.totalorder %s162, %s164
      %p171 = scmp.eq.s32.totalorder %s28, 1
      %p172 = por %p170, %p171
      %p173 = scmp.ne.s32.totalorder %s164, %s165
      %p174 = scmp.eq.s32.totalorder %s28, 0
      %p175 = por %p173, %p174
      %p176 = scmp.ne.s32.totalorder %s164, %s165
      %p177 = scmp.eq.s32.totalorder %s29, 1
      %p178 = por %p176, %p177
      %p180 = scmp.ne.s32.totalorder %s165, %s179
      %p181 = scmp.eq.s32.totalorder %s29, 0
      %p182 = por %p180, %p181
      %s184 = sadd.s32 %s183, 1
      %p187 = scmp.eq.s32.totalorder %s23, 1
      %p188 = scmp.ne.s32.totalorder %s183, %s185
      %p189 = scmp.eq.s32.totalorder %s23, 0
      %p190 = por %p188, %p189
      %p191 = scmp.ne.s32.totalorder %s183, %s185
      %p192 = scmp.eq.s32.totalorder %s28, 1
      %p193 = por %p191, %p192
      %p194 = scmp.ne.s32.totalorder %s185, %s186
      %p195 = scmp.eq.s32.totalorder %s28, 0
      %p196 = por %p194, %p195
      %p197 = scmp.ne.s32.totalorder %s185, %s186
      %p198 = scmp.eq.s32.totalorder %s29, 1
      %p199 = por %p197, %p198
      %p201 = scmp.ne.s32.totalorder %s186, %s200
      %p202 = scmp.eq.s32.totalorder %s29, 0
      %p203 = por %p201, %p202
      %s205 = sadd.s32 %s204, 1
      %p208 = scmp.eq.s32.totalorder %s23, 1
      %p209 = scmp.ne.s32.totalorder %s204, %s206
      %p210 = scmp.eq.s32.totalorder %s23, 0
      %p211 = por %p209, %p210
      %p212 = scmp.ne.s32.totalorder %s204, %s206
      %p213 = scmp.eq.s32.totalorder %s28, 1
      %p214 = por %p212, %p213
      %p215 = scmp.ne.s32.totalorder %s206, %s207
      %p216 = scmp.eq.s32.totalorder %s28, 0
      %p217 = por %p215, %p216
      %p218 = scmp.ne.s32.totalorder %s206, %s207
      %p219 = scmp.eq.s32.totalorder %s29, 1
      %p220 = por %p218, %p219
      %p222 = scmp.ne.s32.totalorder %s207, %s221
      %p223 = scmp.eq.s32.totalorder %s29, 0
      %p224 = por %p222, %p223
      %s226 = sadd.s32 %s225, 1
      %p229 = scmp.eq.s32.totalorder %s23, 1
      %p230 = scmp.ne.s32.totalorder %s225, %s227
      %p231 = scmp.eq.s32.totalorder %s23, 0
      %p232 = por %p230, %p231
      %p233 = scmp.ne.s32.totalorder %s225, %s227
      %p234 = scmp.eq.s32.totalorder %s28, 1
      %p235 = por %p233, %p234
      %p236 = scmp.ne.s32.totalorder %s227, %s228
      %p237 = scmp.eq.s32.totalorder %s28, 0
      %p238 = por %p236, %p237
      %p239 = scmp.ne.s32.totalorder %s227, %s228
      %p240 = scmp.eq.s32.totalorder %s29, 1
      %p241 = por %p239, %p240
      %p243 = scmp.ne.s32.totalorder %s228, %s242
      %p244 = scmp.eq.s32.totalorder %s29, 0
      %p245 = por %p243, %p244
      %s247 = sadd.s32 %s246, 1
      %p250 = scmp.eq.s32.totalorder %s23, 1
      %p251 = scmp.ne.s32.totalorder %s246, %s248
      %p252 = scmp.eq.s32.totalorder %s23, 0
      %p253 = por %p251, %p252
      %p254 = scmp.ne.s32.totalorder %s246, %s248
      %p255 = scmp.eq.s32.totalorder %s28, 1
      %p256 = por %p254, %p255
      %p257 = scmp.ne.s32.totalorder %s248, %s249
      %p258 = scmp.eq.s32.totalorder %s28, 0
      %p259 = por %p257, %p258
      %p260 = scmp.ne.s32.totalorder %s248, %s249
      %p261 = scmp.eq.s32.totalorder %s29, 1
      %p262 = por %p260, %p261
      %p264 = scmp.ne.s32.totalorder %s249, %s263
      %p265 = scmp.eq.s32.totalorder %s29, 0
      %p266 = por %p264, %p265
      %s267 = ssub.s32 %s23, %s30
      %p268 = scmp.eq.s32.totalorder %s267, 0
      %s270 = sadd.s32 %s269, 1
      %s271 = scalar_select %p268, %s269, %s270
      %p274 = pneg %p268
      %p275 = scmp.eq.s32.totalorder %s23, 1
      %p276 = por %p274, %p275
      %p277 = scmp.ne.s32.totalorder %s269, %s272
      %p278 = scmp.eq.s32.totalorder %s23, 0
      %p279 = por %p277, %p278
      %p280 = scmp.ne.s32.totalorder %s269, %s272
      %p281 = scmp.eq.s32.totalorder %s28, 1
      %p282 = por %p280, %p281
      %p283 = scmp.ne.s32.totalorder %s272, %s273
      %p284 = scmp.eq.s32.totalorder %s28, 0
      %p285 = por %p283, %p284
      %p286 = scmp.ne.s32.totalorder %s272, %s273
      %p287 = scmp.eq.s32.totalorder %s29, 1
      %p288 = por %p286, %p287
      %p290 = scmp.ne.s32.totalorder %s273, %s289
      %p291 = scmp.eq.s32.totalorder %s29, 0
      %p292 = por %p290, %p291
      %p293 = scmp.le.s32.totalorder 1, %s23
      %p294 = scmp.lt.s32.totalorder %s23, 3
      %p295 = pnand %p293, %p294
      %p296 = pneg %p295
      // Predicated region
      $region9: #{tpu_custom_call.1} parent=5 // pred_check
        _
      $region10: #{tpu_custom_call.1} parent=5 // pred_check_branch
        %298 = sbr.rel (%p295) target = $region12
      $region11: #{tpu_custom_call.1} parent=5 // pred_region
        %s299 = ssub.s32 %s23, 1
        // Predicated region
        $region13: #{tpu_custom_call.1} parent=11 // pred_check
          %p300 = pneg %p70
        $region14: #{tpu_custom_call.1} parent=11 // pred_check_branch
          %302 = sbr.rel (%p300) target = $region16
        $region15: #{tpu_custom_call.1} parent=11 // pred_region
          %s304 = ssub.s32 6144, 6144
          %305 = vsyncadd [#allocation6], %s304
          %s306 = sshll.u32 [#allocation5], 4
          %s307 = int_to_ptr.vmem [resolvable:$true] %s306
          %312 = dma.hbm_to_vmem [thread:$0]  %s1, 6144, %s307, [#allocation6], 128, 128, 8
        $region16: #{tpu_custom_call.1} parent=11 // pred_fallthru
          _
        // Predicated region
        $region17: #{tpu_custom_call.1} parent=11 // pred_check
          %p313 = pneg %p91
        $region18: #{tpu_custom_call.1} parent=11 // pred_check_branch
          %315 = sbr.rel (%p313) target = $region20
        $region19: #{tpu_custom_call.1} parent=11 // pred_region
          _
        $region20: #{tpu_custom_call.1} parent=11 // pred_fallthru
          _
        // Predicated region
        $region21: #{tpu_custom_call.1} parent=11 // pred_check
          %p316 = pneg %p112
        $region22: #{tpu_custom_call.1} parent=11 // pred_check_branch
          %318 = sbr.rel (%p316) target = $region24
        $region23: #{tpu_custom_call.1} parent=11 // pred_region
          %s320 = ssub.s32 2048, 2048
          %321 = vsyncadd [#allocation6], %s320
          %s322 = sshll.u32 [#allocation7], 4
          %s323 = int_to_ptr.vmem [resolvable:$true] %s322
          %328 = dma.hbm_to_vmem [thread:$0]  %s3, 2048, %s323, [#allocation6], 128, 128, 8
        $region24: #{tpu_custom_call.1} parent=11 // pred_fallthru
          _
        // Predicated region
        $region25: #{tpu_custom_call.1} parent=11 // pred_check
          %p329 = pneg %p133
        $region26: #{tpu_custom_call.1} parent=11 // pred_check_branch
          %331 = sbr.rel (%p329) target = $region28
        $region27: #{tpu_custom_call.1} parent=11 // pred_region
          _
        $region28: #{tpu_custom_call.1} parent=11 // pred_fallthru
          _
        // Predicated region
        $region29: #{tpu_custom_call.1} parent=11 // pred_check
          %p332 = pneg %p154
        $region30: #{tpu_custom_call.1} parent=11 // pred_check_branch
          %334 = sbr.rel (%p332) target = $region32
        $region31: #{tpu_custom_call.1} parent=11 // pred_region
          %s336 = ssub.s32 4096, 4096
          %337 = vsyncadd [#allocation9], %s336
          %s338 = sshll.u32 [#allocation8], 4
          %s339 = int_to_ptr.vmem [resolvable:$true] %s338
          %344 = dma.hbm_to_vmem [thread:$0]  %s5, 4096, %s339, [#allocation9], 128, 128, 8
        $region32: #{tpu_custom_call.1} parent=11 // pred_fallthru
          _
        // Predicated region
        $region33: #{tpu_custom_call.1} parent=11 // pred_check
          %p345 = pneg %p175
        $region34: #{tpu_custom_call.1} parent=11 // pred_check_branch
          %347 = sbr.rel (%p345) target = $region36
        $region35: #{tpu_custom_call.1} parent=11 // pred_region
          _
        $region36: #{tpu_custom_call.1} parent=11 // pred_fallthru
          _
        // Predicated region
        $region37: #{tpu_custom_call.1} parent=11 // pred_check
          %p348 = pneg %p196
        $region38: #{tpu_custom_call.1} parent=11 // pred_check_branch
          %350 = sbr.rel (%p348) target = $region40
        $region39: #{tpu_custom_call.1} parent=11 // pred_region
          %s352 = ssub.s32 4096, 4096
          %353 = vsyncadd [#allocation9], %s352
          %s354 = sshll.u32 [#allocation10], 4
          %s355 = int_to_ptr.vmem [resolvable:$true] %s354
          %360 = dma.hbm_to_vmem [thread:$0]  %s7, 4096, %s355, [#allocation9], 128, 128, 8
        $region40: #{tpu_custom_call.1} parent=11 // pred_fallthru
          _
        // Predicated region
        $region41: #{tpu_custom_call.1} parent=11 // pred_check
          %p361 = pneg %p217
        $region42: #{tpu_custom_call.1} parent=11 // pred_check_branch
          %363 = sbr.rel (%p361) target = $region44
        $region43: #{tpu_custom_call.1} parent=11 // pred_region
          _
        $region44: #{tpu_custom_call.1} parent=11 // pred_fallthru
          _
        // Predicated region
        $region45: #{tpu_custom_call.1} parent=11 // pred_check
          %p364 = pneg %p238
        $region46: #{tpu_custom_call.1} parent=11 // pred_check_branch
          %366 = sbr.rel (%p364) target = $region48
        $region47: #{tpu_custom_call.1} parent=11 // pred_region
          _
        $region48: #{tpu_custom_call.1} parent=11 // pred_fallthru
          _
        // Predicated region
        $region49: #{tpu_custom_call.1} parent=11 // pred_check
          %p367 = pneg %p259
        $region50: #{tpu_custom_call.1} parent=11 // pred_check_branch
          %369 = sbr.rel (%p367) target = $region52
        $region51: #{tpu_custom_call.1} parent=11 // pred_region
          _
        $region52: #{tpu_custom_call.1} parent=11 // pred_fallthru
          _
      $region12: #{tpu_custom_call.1} parent=5 // pred_fallthru
        _
      %p370 = scmp.lt.s32.totalorder %s23, 2
      // Predicated region
      $region53: #{tpu_custom_call.1} parent=5 // pred_check
        %p371 = pneg %p370
      $region54: #{tpu_custom_call.1} parent=5 // pred_check_branch
        %373 = sbr.rel (%p371) target = $region56
      $region55: #{tpu_custom_call.1} parent=5 // pred_region
        // Predicated region
        $region57: #{tpu_custom_call.1} parent=55 // pred_check
          %p374 = pneg %p43
        $region58: #{tpu_custom_call.1} parent=55 // pred_check_branch
          %376 = sbr.rel (%p374) target = $region60
        $region59: #{tpu_custom_call.1} parent=55 // pred_region
          %s377 = sand.u32 %s33, 1
          %s378 = scalar_lea.sflag [#allocation4], %s377
          %s379 = sand.u32 %s33, 1
          %s380 = smul.addr %s379, 16
          %s381 = scalar_lea.vmem [#allocation3], %s380
          %s382 = smul.u32 2, %s23
          %s384 = ssub.s32 256, 256
          %385 = vsyncadd %s378, %s384
          %s386 = smul.addr %s382, 128
          %s387 = scalar_lea.hbm %s0, %s386
          %s388 = sshll.u32 %s381, 4
          %s389 = int_to_ptr.vmem [resolvable:$true] %s388
          %394 = dma.hbm_to_vmem [thread:$0]  %s387, 256, %s389, %s378, 128, 128, 8
        $region60: #{tpu_custom_call.1} parent=55 // pred_fallthru
          _
      $region56: #{tpu_custom_call.1} parent=5 // pred_fallthru
        _
      %p395 = scmp.le.s32.totalorder 1, %s23
      %p396 = scmp.lt.s32.totalorder %s23, 3
      %p397 = pnand %p395, %p396
      %p398 = pneg %p397
      // Predicated region
      $region61: #{tpu_custom_call.1} parent=5 // pred_check
        _
      $region62: #{tpu_custom_call.1} parent=5 // pred_check_branch
        %400 = sbr.rel (%p397) target = $region64
      $region63: #{tpu_custom_call.1} parent=5 // pred_region
        %s401 = ssub.s32 %s23, 1
        %s402 = sand.u32 %s36, 1
        %s403 = scalar_lea.sflag [#allocation4], %s402
        %s404 = sand.u32 %s36, 1
        %s405 = smul.addr %s404, 16
        %s406 = scalar_lea.vmem [#allocation3], %s405
        // Predicated region
        $region65: #{tpu_custom_call.1} parent=63 // pred_check
          %p407 = pneg %p49
        $region66: #{tpu_custom_call.1} parent=63 // pred_check_branch
          %409 = sbr.rel (%p407) target = $region68
        $region67: #{tpu_custom_call.1} parent=63 // pred_region
          %410 = dma.done %s403, 256
        $region68: #{tpu_custom_call.1} parent=63 // pred_fallthru
          _
        // Predicated region
        $region69: #{tpu_custom_call.1} parent=63 // pred_check
          %p411 = pneg %p70
        $region70: #{tpu_custom_call.1} parent=63 // pred_check_branch
          %413 = sbr.rel (%p411) target = $region72
        $region71: #{tpu_custom_call.1} parent=63 // pred_region
          %414 = dma.done [#allocation6], 6144
        $region72: #{tpu_custom_call.1} parent=63 // pred_fallthru
          _
        // Predicated region
        $region73: #{tpu_custom_call.1} parent=63 // pred_check
          %p415 = pneg %p112
        $region74: #{tpu_custom_call.1} parent=63 // pred_check_branch
          %417 = sbr.rel (%p415) target = $region76
        $region75: #{tpu_custom_call.1} parent=63 // pred_region
          %418 = dma.done [#allocation6], 2048
        $region76: #{tpu_custom_call.1} parent=63 // pred_fallthru
          _
        // Predicated region
        $region77: #{tpu_custom_call.1} parent=63 // pred_check
          %p419 = pneg %p154
        $region78: #{tpu_custom_call.1} parent=63 // pred_check_branch
          %421 = sbr.rel (%p419) target = $region80
        $region79: #{tpu_custom_call.1} parent=63 // pred_region
          %422 = dma.done [#allocation9], 4096
        $region80: #{tpu_custom_call.1} parent=63 // pred_fallthru
          _
        // Predicated region
        $region81: #{tpu_custom_call.1} parent=63 // pred_check
          %p423 = pneg %p196
        $region82: #{tpu_custom_call.1} parent=63 // pred_check_branch
          %425 = sbr.rel (%p423) target = $region84
        $region83: #{tpu_custom_call.1} parent=63 // pred_region
          %426 = dma.done [#allocation9], 4096
        $region84: #{tpu_custom_call.1} parent=63 // pred_fallthru
          _
        %s427 = sand.u32 %s36, 1
        %s428 = scalar_lea.sflag [#allocation4], %s427
        %s429 = sand.u32 %s36, 1
        %s430 = smul.addr %s429, 16
        %s431 = scalar_lea.vmem [#allocation3], %s430
        %p432 = pneg %p49
        %p433 = pneg %p46
        %p434 = pneg %p70
        %p435 = pneg %p67
        %p436 = pneg %p91
        %p437 = pneg %p88
        %p438 = pneg %p112
        %p439 = pneg %p109
        %p440 = pneg %p133
        %p441 = pneg %p130
        %p442 = pneg %p154
        %p443 = pneg %p151
        %p444 = pneg %p175
        %p445 = pneg %p172
        %p446 = pneg %p196
        %p447 = pneg %p193
        %p448 = pneg %p217
        %p449 = pneg %p214
        %p450 = pneg %p238
        %p451 = pneg %p235
        %p452 = pneg %p259
        %p453 = pneg %p256
        %p454 = pneg %p285
        %p455 = pneg %p282
        %s456 = smul.u32 2, %s28
        %p457 = scmp.lt.s32.totalorder %s456, 3
        %s458 = scalar_select %p457, %s456, 3
        %s459 = smul.addr %s458, 8
        %s460 = scalar_lea.vmem %s11, %s459
        %s461 = smul.u32 2, %s28
        %s462 = smul.u32 2, %s28
        %p463 = scmp.lt.s32.totalorder %s462, 3
        %s464 = scalar_select %p463, %s462, 3
        %s465 = smul.addr %s464, 8
        %s466 = scalar_lea.vmem %s11, %s465
        %s467 = smul.u32 2, %s28
        %v469 = vld [vmem:[%s406] sm:$0xff]
        %v470 = vld [vmem:[%s406 + $0x8] sm:$0xff]
        %v471 = vpack.c.bf16 %v470, %v469
        %v472 = vld [vmem:[#allocation5] sm:$0xff]
        %v473 = vld [vmem:[#allocation5 + $0x8] sm:$0xff]
        %v474 = vld [vmem:[#allocation5 + $0x10] sm:$0xff]
        %v475 = vld [vmem:[#allocation5 + $0x18] sm:$0xff]
        %v476 = vld [vmem:[#allocation5 + $0x20] sm:$0xff]
        %v477 = vld [vmem:[#allocation5 + $0x28] sm:$0xff]
        %v478 = vld [vmem:[#allocation5 + $0x30] sm:$0xff]
        %v479 = vld [vmem:[#allocation5 + $0x38] sm:$0xff]
        %v480 = vld [vmem:[#allocation5 + $0x40] sm:$0xff]
        %v481 = vld [vmem:[#allocation5 + $0x48] sm:$0xff]
        %v482 = vld [vmem:[#allocation5 + $0x50] sm:$0xff]
        %v483 = vld [vmem:[#allocation5 + $0x58] sm:$0xff]
        %v484 = vld [vmem:[#allocation5 + $0x60] sm:$0xff]
        %v485 = vld [vmem:[#allocation5 + $0x68] sm:$0xff]
        %v486 = vld [vmem:[#allocation5 + $0x70] sm:$0xff]
        %v487 = vld [vmem:[#allocation5 + $0x78] sm:$0xff]
        %v504 = vunpack.c.l.b16 %v472
        %v505 = vunpack.c.h.b16 %v472
        %v506 = vunpack.c.l.b16 %v473
        %v507 = vunpack.c.h.b16 %v473
        %v508 = vunpack.c.l.b16 %v474
        %v509 = vunpack.c.h.b16 %v474
        %v510 = vunpack.c.l.b16 %v475
        %v511 = vunpack.c.h.b16 %v475
        %v512 = vunpack.c.l.b16 %v476
        %v513 = vunpack.c.h.b16 %v476
        %v514 = vunpack.c.l.b16 %v477
        %v515 = vunpack.c.h.b16 %v477
        %v516 = vunpack.c.l.b16 %v478
        %v517 = vunpack.c.h.b16 %v478
        %v518 = vunpack.c.l.b16 %v479
        %v519 = vunpack.c.h.b16 %v479
        %v520 = vunpack.c.l.b16 %v480
        %v521 = vunpack.c.h.b16 %v480
        %v522 = vunpack.c.l.b16 %v481
        %v523 = vunpack.c.h.b16 %v481
        %v524 = vunpack.c.l.b16 %v482
        %v525 = vunpack.c.h.b16 %v482
        %v526 = vunpack.c.l.b16 %v483
        %v527 = vunpack.c.h.b16 %v483
        %v528 = vunpack.c.l.b16 %v484
        %v529 = vunpack.c.h.b16 %v484
        %v530 = vunpack.c.l.b16 %v485
        %v531 = vunpack.c.h.b16 %v485
        %v532 = vunpack.c.l.b16 %v486
        %v533 = vunpack.c.h.b16 %v486
        %v534 = vunpack.c.l.b16 %v487
        %v535 = vunpack.c.h.b16 %v487
        %v536 = vpack.c.b16 %v506, %v504
        %v537 = vpack.c.b16 %v507, %v505
        %v538 = vpack.c.b16 %v510, %v508
        %v539 = vpack.c.b16 %v511, %v509
        %v540 = vpack.c.b16 %v514, %v512
        %v541 = vpack.c.b16 %v515, %v513
        %v542 = vpack.c.b16 %v518, %v516
        %v543 = vpack.c.b16 %v519, %v517
        %v544 = vpack.c.b16 %v522, %v520
        %v545 = vpack.c.b16 %v523, %v521
        %v546 = vpack.c.b16 %v526, %v524
        %v547 = vpack.c.b16 %v527, %v525
        %v548 = vpack.c.b16 %v530, %v528
        %v549 = vpack.c.b16 %v531, %v529
        %v550 = vpack.c.b16 %v534, %v532
        %v551 = vpack.c.b16 %v535, %v533
        %568 = vmatprep.subr.bf16.mxu0 %v537
        %569 = vmatpush1.bf16.msra.mxu0 %v536
        %570 = vmatprep.subr.bf16.mxu0 %v539
        %571 = vmatpush1.bf16.msra.mxu0 %v538
        %572 = vmatprep.subr.bf16.mxu0 %v541
        %573 = vmatpush1.bf16.msra.mxu0 %v540
        %574 = vmatprep.subr.bf16.mxu0 %v543
        %575 = vmatpush1.bf16.msra.mxu0 %v542
        %576 = vmatprep.subr.bf16.mxu0 %v545
        %577 = vmatpush1.bf16.msra.mxu0 %v544
        %578 = vmatprep.subr.bf16.mxu0 %v547
        %579 = vmatpush1.bf16.msra.mxu0 %v546
        %580 = vmatprep.subr.bf16.mxu0 %v549
        %581 = vmatpush1.bf16.msra.mxu0 %v548
        %582 = vmatprep.subr.bf16.mxu0 %v551
        %583 = vmatpush1.bf16.msra.mxu0 %v550
        %584 = vmatprep.subr.bf16.mxu0 0
        %585 = vmatpush1.bf16.msra.mxu0 0
        %586 = vmatprep.subr.bf16.mxu0 0
        %587 = vmatpush1.bf16.msra.mxu0 0
        %588 = vmatprep.subr.bf16.mxu0 0
        %589 = vmatpush1.bf16.msra.mxu0 0
        %590 = vmatprep.subr.bf16.mxu0 0
        %591 = vmatpush1.bf16.msra.mxu0 0
        %592 = vmatprep.subr.bf16.mxu0 0
        %593 = vmatpush1.bf16.msra.mxu0 0
        %594 = vmatprep.subr.bf16.mxu0 0
        %595 = vmatpush1.bf16.msra.mxu0 0
        %596 = vmatprep.subr.bf16.mxu0 0
        %597 = vmatpush1.bf16.msra.mxu0 0
        %598 = vmatprep.subr.bf16.mxu0 0
        %599 = vmatpush1.bf16.msra.mxu0 0
        %600 = vmatprep.mubr.bf16.mxu0 0
        %601 = vmatmul.mubr.bf16.gmra.mrb[0].mxu0 %v471
        %v602 = vpop.f32.mrb[0].mxu0
        %v603 = vadd.f32 0.0, %v602
        %v604 = vpop.f32.mrb[0].mxu0
        %v605 = vadd.f32 0.0, %v604
        %v606 = vpop.f32.mrb[0].mxu0
        %v607 = vadd.f32 0.0, %v606
        %v608 = vpop.f32.mrb[0].mxu0
        %v609 = vadd.f32 0.0, %v608
        %610 = vdwg.mxu0
        %v611 = vxor.u32 %v605, 2147483648
        %v612 = vxor.u32 %v609, 2147483648
        %v613 = vmul.f32 %v611, 1.442695
        %v614 = vpow.pop %v613
        %v615 = vmul.f32 %v612, 1.442695
        %v616 = vpow.pop %v615
        %v617 = vadd.f32 %v614, 1.0
        %v618 = vadd.f32 %v616, 1.0
        %v619 = vrcp.pop %v617
        %v620 = vmul.f32 1.0, %v619
        %v621 = vrcp.pop %v618
        %v622 = vmul.f32 1.0, %v621
        %v623 = vld [vmem:[%s2] sm:$0x1]
        %v625 = vlaneseq
        %v626 = vshrl.u32 %v625, 7
        %v627 = vsub.s32 0, %v626
        %v628 = vrot.slane %v623, %v627
        %v630 = vadd.f32 %v603, %v628
        %v631 = vadd.f32 %v607, %v628
        %v632 = vmul.f32 %v469, %v630
        %v633 = vmul.f32 %v470, %v631
        %v634 = vmul.f32 %v632, %v620
        %v635 = vmul.f32 %v633, %v622
        %v636 = vadd.f32 %v634, %v469
        %v637 = vadd.f32 %v635, %v470
        %v638 = vpack.c.bf16 %v637, %v636
        %s639 = scalar_lea.vmem [#allocation5], 128
        %v640 = vld [vmem:[%s639] sm:$0xff]
        %v641 = vld [vmem:[%s639 + $0x8] sm:$0xff]
        %v642 = vld [vmem:[%s639 + $0x10] sm:$0xff]
        %v643 = vld [vmem:[%s639 + $0x18] sm:$0xff]
        %v644 = vld [vmem:[%s639 + $0x20] sm:$0xff]
        %v645 = vld [vmem:[%s639 + $0x28] sm:$0xff]
        %v646 = vld [vmem:[%s639 + $0x30] sm:$0xff]
        %v647 = vld [vmem:[%s639 + $0x38] sm:$0xff]
        %v648 = vld [vmem:[%s639 + $0x40] sm:$0xff]
        %v649 = vld [vmem:[%s639 + $0x48] sm:$0xff]
        %v650 = vld [vmem:[%s639 + $0x50] sm:$0xff]
        %v651 = vld [vmem:[%s639 + $0x58] sm:$0xff]
        %v652 = vld [vmem:[%s639 + $0x60] sm:$0xff]
        %v653 = vld [vmem:[%s639 + $0x68] sm:$0xff]
        %v654 = vld [vmem:[%s639 + $0x70] sm:$0xff]
        %v655 = vld [vmem:[%s639 + $0x78] sm:$0xff]
        %v672 = vunpack.c.l.b16 %v640
        %v673 = vunpack.c.h.b16 %v640
        %v674 = vunpack.c.l.b16 %v641
        %v675 = vunpack.c.h.b16 %v641
        %v676 = vunpack.c.l.b16 %v642
        %v677 = vunpack.c.h.b16 %v642
        %v678 = vunpack.c.l.b16 %v643
        %v679 = vunpack.c.h.b16 %v643
        %v680 = vunpack.c.l.b16 %v644
        %v681 = vunpack.c.h.b16 %v644
        %v682 = vunpack.c.l.b16 %v645
        %v683 = vunpack.c.h.b16 %v645
        %v684 = vunpack.c.l.b16 %v646
        %v685 = vunpack.c.h.b16 %v646
        %v686 = vunpack.c.l.b16 %v647
        %v687 = vunpack.c.h.b16 %v647
        %v688 = vunpack.c.l.b16 %v648
        %v689 = vunpack.c.h.b16 %v648
        %v690 = vunpack.c.l.b16 %v649
        %v691 = vunpack.c.h.b16 %v649
        %v692 = vunpack.c.l.b16 %v650
        %v693 = vunpack.c.h.b16 %v650
        %v694 = vunpack.c.l.b16 %v651
        %v695 = vunpack.c.h.b16 %v651
        %v696 = vunpack.c.l.b16 %v652
        %v697 = vunpack.c.h.b16 %v652
        %v698 = vunpack.c.l.b16 %v653
        %v699 = vunpack.c.h.b16 %v653
        %v700 = vunpack.c.l.b16 %v654
        %v701 = vunpack.c.h.b16 %v654
        %v702 = vunpack.c.l.b16 %v655
        %v703 = vunpack.c.h.b16 %v655
        %v704 = vpack.c.b16 %v674, %v672
        %v705 = vpack.c.b16 %v675, %v673
        %v706 = vpack.c.b16 %v678, %v676
        %v707 = vpack.c.b16 %v679, %v677
        %v708 = vpack.c.b16 %v682, %v680
        %v709 = vpack.c.b16 %v683, %v681
        %v710 = vpack.c.b16 %v686, %v684
        %v711 = vpack.c.b16 %v687, %v685
        %v712 = vpack.c.b16 %v690, %v688
        %v713 = vpack.c.b16 %v691, %v689
        %v714 = vpack.c.b16 %v694, %v692
        %v715 = vpack.c.b16 %v695, %v693
        %v716 = vpack.c.b16 %v698, %v696
        %v717 = vpack.c.b16 %v699, %v697
        %v718 = vpack.c.b16 %v702, %v700
        %v719 = vpack.c.b16 %v703, %v701
        %736 = vmatprep.subr.bf16.mxu0 %v705
        %737 = vmatpush1.bf16.msra.mxu0 %v704
        %738 = vmatprep.subr.bf16.mxu0 %v707
        %739 = vmatpush1.bf16.msra.mxu0 %v706
        %740 = vmatprep.subr.bf16.mxu0 %v709
        %741 = vmatpush1.bf16.msra.mxu0 %v708
        %742 = vmatprep.subr.bf16.mxu0 %v711
        %743 = vmatpush1.bf16.msra.mxu0 %v710
        %744 = vmatprep.subr.bf16.mxu0 %v713
        %745 = vmatpush1.bf16.msra.mxu0 %v712
        %746 = vmatprep.subr.bf16.mxu0 %v715
        %747 = vmatpush1.bf16.msra.mxu0 %v714
        %748 = vmatprep.subr.bf16.mxu0 %v717
        %749 = vmatpush1.bf16.msra.mxu0 %v716
        %750 = vmatprep.subr.bf16.mxu0 %v719
        %751 = vmatpush1.bf16.msra.mxu0 %v718
        %752 = vmatprep.subr.bf16.mxu0 0
        %753 = vmatpush1.bf16.msra.mxu0 0
        %754 = vmatprep.subr.bf16.mxu0 0
        %755 = vmatpush1.bf16.msra.mxu0 0
        %756 = vmatprep.subr.bf16.mxu0 0
        %757 = vmatpush1.bf16.msra.mxu0 0
        %758 = vmatprep.subr.bf16.mxu0 0
        %759 = vmatpush1.bf16.msra.mxu0 0
        %760 = vmatprep.subr.bf16.mxu0 0
        %761 = vmatpush1.bf16.msra.mxu0 0
        %762 = vmatprep.subr.bf16.mxu0 0
        %763 = vmatpush1.bf16.msra.mxu0 0
        %764 = vmatprep.subr.bf16.mxu0 0
        %765 = vmatpush1.bf16.msra.mxu0 0
        %766 = vmatprep.subr.bf16.mxu0 0
        %767 = vmatpush1.bf16.msra.mxu0 0
        %768 = vmatprep.mubr.bf16.mxu0 0
        %769 = vmatmul.mubr.bf16.gmra.mrb[0].mxu0 %v638
        %v770 = vpop.f32.mrb[0].mxu0
        %v771 = vadd.f32 0.0, %v770
        %v772 = vpop.f32.mrb[0].mxu0
        %v773 = vadd.f32 0.0, %v772
        %v774 = vpop.f32.mrb[0].mxu0
        %v775 = vadd.f32 0.0, %v774
        %v776 = vpop.f32.mrb[0].mxu0
        %v777 = vadd.f32 0.0, %v776
        %778 = vdwg.mxu0
        %v779 = vxor.u32 %v773, 2147483648
        %v780 = vxor.u32 %v777, 2147483648
        %v781 = vmul.f32 %v779, 1.442695
        %v782 = vpow.pop %v781
        %v783 = vmul.f32 %v780, 1.442695
        %v784 = vpow.pop %v783
        %v785 = vadd.f32 %v782, 1.0
        %v786 = vadd.f32 %v784, 1.0
        %v787 = vrcp.pop %v785
        %v788 = vmul.f32 1.0, %v787
        %v789 = vrcp.pop %v786
        %v790 = vmul.f32 1.0, %v789
        %s791 = scalar_lea.vmem %s2, 1
        %v792 = vld [vmem:[%s791] sm:$0x1]
        %v794 = vlaneseq
        %v795 = vshrl.u32 %v794, 7
        %v796 = vsub.s32 0, %v795
        %v797 = vrot.slane %v792, %v796
        %v799 = vadd.f32 %v771, %v797
        %v800 = vadd.f32 %v775, %v797
        %v801 = vmul.f32 %v469, %v799
        %v802 = vmul.f32 %v470, %v800
        %v803 = vmul.f32 %v801, %v788
        %v804 = vmul.f32 %v802, %v790
        %v805 = vadd.f32 %v803, %v636
        %v806 = vadd.f32 %v804, %v637
        %v807 = vpack.c.bf16 %v806, %v805
        %s808 = scalar_lea.vmem [#allocation5], 256
        %v809 = vld [vmem:[%s808] sm:$0xff]
        %v810 = vld [vmem:[%s808 + $0x8] sm:$0xff]
        %v811 = vld [vmem:[%s808 + $0x10] sm:$0xff]
        %v812 = vld [vmem:[%s808 + $0x18] sm:$0xff]
        %v813 = vld [vmem:[%s808 + $0x20] sm:$0xff]
        %v814 = vld [vmem:[%s808 + $0x28] sm:$0xff]
        %v815 = vld [vmem:[%s808 + $0x30] sm:$0xff]
        %v816 = vld [vmem:[%s808 + $0x38] sm:$0xff]
        %v817 = vld [vmem:[%s808 + $0x40] sm:$0xff]
        %v818 = vld [vmem:[%s808 + $0x48] sm:$0xff]
        %v819 = vld [vmem:[%s808 + $0x50] sm:$0xff]
        %v820 = vld [vmem:[%s808 + $0x58] sm:$0xff]
        %v821 = vld [vmem:[%s808 + $0x60] sm:$0xff]
        %v822 = vld [vmem:[%s808 + $0x68] sm:$0xff]
        %v823 = vld [vmem:[%s808 + $0x70] sm:$0xff]
        %v824 = vld [vmem:[%s808 + $0x78] sm:$0xff]
        %v841 = vunpack.c.l.b16 %v809
        %v842 = vunpack.c.h.b16 %v809
        %v843 = vunpack.c.l.b16 %v810
        %v844 = vunpack.c.h.b16 %v810
        %v845 = vunpack.c.l.b16 %v811
        %v846 = vunpack.c.h.b16 %v811
        %v847 = vunpack.c.l.b16 %v812
        %v848 = vunpack.c.h.b16 %v812
        %v849 = vunpack.c.l.b16 %v813
        %v850 = vunpack.c.h.b16 %v813
        %v851 = vunpack.c.l.b16 %v814
        %v852 = vunpack.c.h.b16 %v814
        %v853 = vunpack.c.l.b16 %v815
        %v854 = vunpack.c.h.b16 %v815
        %v855 = vunpack.c.l.b16 %v816
        %v856 = vunpack.c.h.b16 %v816
        %v857 = vunpack.c.l.b16 %v817
        %v858 = vunpack.c.h.b16 %v817
        %v859 = vunpack.c.l.b16 %v818
        %v860 = vunpack.c.h.b16 %v818
        %v861 = vunpack.c.l.b16 %v819
        %v862 = vunpack.c.h.b16 %v819
        %v863 = vunpack.c.l.b16 %v820
        %v864 = vunpack.c.h.b16 %v820
        %v865 = vunpack.c.l.b16 %v821
        %v866 = vunpack.c.h.b16 %v821
        %v867 = vunpack.c.l.b16 %v822
        %v868 = vunpack.c.h.b16 %v822
        %v869 = vunpack.c.l.b16 %v823
        %v870 = vunpack.c.h.b16 %v823
        %v871 = vunpack.c.l.b16 %v824
        %v872 = vunpack.c.h.b16 %v824
        %v873 = vpack.c.b16 %v843, %v841
        %v874 = vpack.c.b16 %v844, %v842
        %v875 = vpack.c.b16 %v847, %v845
        %v876 = vpack.c.b16 %v848, %v846
        %v877 = vpack.c.b16 %v851, %v849
        %v878 = vpack.c.b16 %v852, %v850
        %v879 = vpack.c.b16 %v855, %v853
        %v880 = vpack.c.b16 %v856, %v854
        %v881 = vpack.c.b16 %v859, %v857
        %v882 = vpack.c.b16 %v860, %v858
        %v883 = vpack.c.b16 %v863, %v861
        %v884 = vpack.c.b16 %v864, %v862
        %v885 = vpack.c.b16 %v867, %v865
        %v886 = vpack.c.b16 %v868, %v866
        %v887 = vpack.c.b16 %v871, %v869
        %v888 = vpack.c.b16 %v872, %v870
        %905 = vmatprep.subr.bf16.mxu0 %v874
        %906 = vmatpush1.bf16.msra.mxu0 %v873
        %907 = vmatprep.subr.bf16.mxu0 %v876
        %908 = vmatpush1.bf16.msra.mxu0 %v875
        %909 = vmatprep.subr.bf16.mxu0 %v878
        %910 = vmatpush1.bf16.msra.mxu0 %v877
        %911 = vmatprep.subr.bf16.mxu0 %v880
        %912 = vmatpush1.bf16.msra.mxu0 %v879
        %913 = vmatprep.subr.bf16.mxu0 %v882
        %914 = vmatpush1.bf16.msra.mxu0 %v881
        %915 = vmatprep.subr.bf16.mxu0 %v884
        %916 = vmatpush1.bf16.msra.mxu0 %v883
        %917 = vmatprep.subr.bf16.mxu0 %v886
        %918 = vmatpush1.bf16.msra.mxu0 %v885
        %919 = vmatprep.subr.bf16.mxu0 %v888
        %920 = vmatpush1.bf16.msra.mxu0 %v887
        %921 = vmatprep.subr.bf16.mxu0 0
        %922 = vmatpush1.bf16.msra.mxu0 0
        %923 = vmatprep.subr.bf16.mxu0 0
        %924 = vmatpush1.bf16.msra.mxu0 0
        %925 = vmatprep.subr.bf16.mxu0 0
        %926 = vmatpush1.bf16.msra.mxu0 0
        %927 = vmatprep.subr.bf16.mxu0 0
        %928 = vmatpush1.bf16.msra.mxu0 0
        %929 = vmatprep.subr.bf16.mxu0 0
        %930 = vmatpush1.bf16.msra.mxu0 0
        %931 = vmatprep.subr.bf16.mxu0 0
        %932 = vmatpush1.bf16.msra.mxu0 0
        %933 = vmatprep.subr.bf16.mxu0 0
        %934 = vmatpush1.bf16.msra.mxu0 0
        %935 = vmatprep.subr.bf16.mxu0 0
        %936 = vmatpush1.bf16.msra.mxu0 0
        %937 = vmatprep.mubr.bf16.mxu0 0
        %938 = vmatmul.mubr.bf16.gmra.mrb[0].mxu0 %v807
        %v939 = vpop.f32.mrb[0].mxu0
        %v940 = vadd.f32 0.0, %v939
        %v941 = vpop.f32.mrb[0].mxu0
        %v942 = vadd.f32 0.0, %v941
        %v943 = vpop.f32.mrb[0].mxu0
        %v944 = vadd.f32 0.0, %v943
        %v945 = vpop.f32.mrb[0].mxu0
        %v946 = vadd.f32 0.0, %v945
        %947 = vdwg.mxu0
        %v948 = vxor.u32 %v942, 2147483648
        %v949 = vxor.u32 %v946, 2147483648
        %v950 = vmul.f32 %v948, 1.442695
        %v951 = vpow.pop %v950
        %v952 = vmul.f32 %v949, 1.442695
        %v953 = vpow.pop %v952
        %v954 = vadd.f32 %v951, 1.0
        %v955 = vadd.f32 %v953, 1.0
        %v956 = vrcp.pop %v954
        %v957 = vmul.f32 1.0, %v956
        %v958 = vrcp.pop %v955
        %v959 = vmul.f32 1.0, %v958
        %s960 = scalar_lea.vmem %s2, 2
        %v961 = vld [vmem:[%s960] sm:$0x1]
        %v963 = vlaneseq
        %v964 = vshrl.u32 %v963, 7
        %v965 = vsub.s32 0, %v964
        %v966 = vrot.slane %v961, %v965
        %v968 = vadd.f32 %v940, %v966
        %v969 = vadd.f32 %v944, %v966
        %v970 = vmul.f32 %v469, %v968
        %v971 = vmul.f32 %v470, %v969
        %v972 = vmul.f32 %v970, %v957
        %v973 = vmul.f32 %v971, %v959
        %v974 = vadd.f32 %v972, %v805
        %v975 = vadd.f32 %v973, %v806
        %v976 = vpack.c.bf16 %v975, %v974
        %v977 = vld [vmem:[#allocation7] sm:$0xff]
        %v978 = vld [vmem:[#allocation7 + $0x8] sm:$0xff]
        %v979 = vld [vmem:[#allocation7 + $0x10] sm:$0xff]
        %v980 = vld [vmem:[#allocation7 + $0x18] sm:$0xff]
        %v981 = vld [vmem:[#allocation7 + $0x20] sm:$0xff]
        %v982 = vld [vmem:[#allocation7 + $0x28] sm:$0xff]
        %v983 = vld [vmem:[#allocation7 + $0x30] sm:$0xff]
        %v984 = vld [vmem:[#allocation7 + $0x38] sm:$0xff]
        %v985 = vld [vmem:[#allocation7 + $0x40] sm:$0xff]
        %v986 = vld [vmem:[#allocation7 + $0x48] sm:$0xff]
        %v987 = vld [vmem:[#allocation7 + $0x50] sm:$0xff]
        %v988 = vld [vmem:[#allocation7 + $0x58] sm:$0xff]
        %v989 = vld [vmem:[#allocation7 + $0x60] sm:$0xff]
        %v990 = vld [vmem:[#allocation7 + $0x68] sm:$0xff]
        %v991 = vld [vmem:[#allocation7 + $0x70] sm:$0xff]
        %v992 = vld [vmem:[#allocation7 + $0x78] sm:$0xff]
        %v993 = vld [vmem:[%s4] sm:$0x3]
        %v995 = vlaneseq
        %v996 = vshrl.u32 %v995, 7
        %v997 = vsub.s32 0, %v996
        %v998 = vrot.slane %v993, %v997
        %v999 = vlaneseq
        %v1000 = vshrl.u32 %v999, 7
        %v1001 = vsub.s32 1, %v1000
        %v1002 = vrot.slane %v993, %v1001
        %v1021 = vunpack.c.l.b16 %v977
        %v1022 = vunpack.c.h.b16 %v977
        %v1023 = vunpack.c.l.b16 %v978
        %v1024 = vunpack.c.h.b16 %v978
        %v1025 = vunpack.c.l.b16 %v979
        %v1026 = vunpack.c.h.b16 %v979
        %v1027 = vunpack.c.l.b16 %v980
        %v1028 = vunpack.c.h.b16 %v980
        %v1029 = vunpack.c.l.b16 %v981
        %v1030 = vunpack.c.h.b16 %v981
        %v1031 = vunpack.c.l.b16 %v982
        %v1032 = vunpack.c.h.b16 %v982
        %v1033 = vunpack.c.l.b16 %v983
        %v1034 = vunpack.c.h.b16 %v983
        %v1035 = vunpack.c.l.b16 %v984
        %v1036 = vunpack.c.h.b16 %v984
        %v1037 = vunpack.c.l.b16 %v985
        %v1038 = vunpack.c.h.b16 %v985
        %v1039 = vunpack.c.l.b16 %v986
        %v1040 = vunpack.c.h.b16 %v986
        %v1041 = vunpack.c.l.b16 %v987
        %v1042 = vunpack.c.h.b16 %v987
        %v1043 = vunpack.c.l.b16 %v988
        %v1044 = vunpack.c.h.b16 %v988
        %v1045 = vunpack.c.l.b16 %v989
        %v1046 = vunpack.c.h.b16 %v989
        %v1047 = vunpack.c.l.b16 %v990
        %v1048 = vunpack.c.h.b16 %v990
        %v1049 = vunpack.c.l.b16 %v991
        %v1050 = vunpack.c.h.b16 %v991
        %v1051 = vunpack.c.l.b16 %v992
        %v1052 = vunpack.c.h.b16 %v992
        %v1053 = vpack.c.b16 %v1023, %v1021
        %v1054 = vpack.c.b16 %v1024, %v1022
        %v1055 = vpack.c.b16 %v1027, %v1025
        %v1056 = vpack.c.b16 %v1028, %v1026
        %v1057 = vpack.c.b16 %v1031, %v1029
        %v1058 = vpack.c.b16 %v1032, %v1030
        %v1059 = vpack.c.b16 %v1035, %v1033
        %v1060 = vpack.c.b16 %v1036, %v1034
        %v1061 = vpack.c.b16 %v1039, %v1037
        %v1062 = vpack.c.b16 %v1040, %v1038
        %v1063 = vpack.c.b16 %v1043, %v1041
        %v1064 = vpack.c.b16 %v1044, %v1042
        %v1065 = vpack.c.b16 %v1047, %v1045
        %v1066 = vpack.c.b16 %v1048, %v1046
        %v1067 = vpack.c.b16 %v1051, %v1049
        %v1068 = vpack.c.b16 %v1052, %v1050
        %1085 = vmatprep.subr.bf16.mxu0 %v1054
        %1086 = vmatpush1.bf16.msra.mxu0 %v1053
        %1087 = vmatprep.subr.bf16.mxu0 %v1056
        %1088 = vmatpush1.bf16.msra.mxu0 %v1055
        %1089 = vmatprep.subr.bf16.mxu0 %v1058
        %1090 = vmatpush1.bf16.msra.mxu0 %v1057
        %1091 = vmatprep.subr.bf16.mxu0 %v1060
        %1092 = vmatpush1.bf16.msra.mxu0 %v1059
        %1093 = vmatprep.subr.bf16.mxu0 %v1062
        %1094 = vmatpush1.bf16.msra.mxu0 %v1061
        %1095 = vmatprep.subr.bf16.mxu0 %v1064
        %1096 = vmatpush1.bf16.msra.mxu0 %v1063
        %1097 = vmatprep.subr.bf16.mxu0 %v1066
        %1098 = vmatpush1.bf16.msra.mxu0 %v1065
        %1099 = vmatprep.subr.bf16.mxu0 %v1068
        %1100 = vmatpush1.bf16.msra.mxu0 %v1067
        %1101 = vmatprep.subr.bf16.mxu0 0
        %1102 = vmatpush1.bf16.msra.mxu0 0
        %1103 = vmatprep.subr.bf16.mxu0 0
        %1104 = vmatpush1.bf16.msra.mxu0 0
        %1105 = vmatprep.subr.bf16.mxu0 0
        %1106 = vmatpush1.bf16.msra.mxu0 0
        %1107 = vmatprep.subr.bf16.mxu0 0
        %1108 = vmatpush1.bf16.msra.mxu0 0
        %1109 = vmatprep.subr.bf16.mxu0 0
        %1110 = vmatpush1.bf16.msra.mxu0 0
        %1111 = vmatprep.subr.bf16.mxu0 0
        %1112 = vmatpush1.bf16.msra.mxu0 0
        %1113 = vmatprep.subr.bf16.mxu0 0
        %1114 = vmatpush1.bf16.msra.mxu0 0
        %1115 = vmatprep.subr.bf16.mxu0 0
        %1116 = vmatpush1.bf16.msra.mxu0 0
        %1117 = vmatprep.mubr.bf16.mxu0 0
        %1118 = vmatmul.mubr.bf16.gmra.mrb[0].mxu0 %v976
        %v1119 = vpop.f32.mrb[0].mxu0
        %v1120 = vadd.f32 %v998, %v1119
        %v1121 = vpop.f32.mrb[0].mxu0
        %v1122 = vadd.f32 %v1002, %v1121
        %v1123 = vpop.f32.mrb[0].mxu0
        %v1124 = vadd.f32 %v998, %v1123
        %v1125 = vpop.f32.mrb[0].mxu0
        %v1126 = vadd.f32 %v1002, %v1125
        %1127 = vdwg.mxu0
        %v1128 = vmax.f32 %v1120, 0.0
        %v1129 = vmax.f32 %v1122, 0.0
        %v1130 = vmax.f32 %v1124, 0.0
        %v1131 = vmax.f32 %v1126, 0.0
        %v1132 = vpack.c.bf16 %v1130, %v1128
        %v1133 = vpack.c.bf16 %v1131, %v1129
        %v1134 = vld [vmem:[#allocation8] sm:$0xff]
        %v1135 = vld [vmem:[#allocation8 + $0x8] sm:$0xff]
        %v1136 = vld [vmem:[#allocation8 + $0x10] sm:$0xff]
        %v1137 = vld [vmem:[#allocation8 + $0x18] sm:$0xff]
        %v1138 = vld [vmem:[#allocation8 + $0x20] sm:$0xff]
        %v1139 = vld [vmem:[#allocation8 + $0x28] sm:$0xff]
        %v1140 = vld [vmem:[#allocation8 + $0x30] sm:$0xff]
        %v1141 = vld [vmem:[#allocation8 + $0x38] sm:$0xff]
        %v1142 = vld [vmem:[#allocation8 + $0x40] sm:$0xff]
        %v1143 = vld [vmem:[#allocation8 + $0x48] sm:$0xff]
        %v1144 = vld [vmem:[#allocation8 + $0x50] sm:$0xff]
        %v1145 = vld [vmem:[#allocation8 + $0x58] sm:$0xff]
        %v1146 = vld [vmem:[#allocation8 + $0x60] sm:$0xff]
        %v1147 = vld [vmem:[#allocation8 + $0x68] sm:$0xff]
        %v1148 = vld [vmem:[#allocation8 + $0x70] sm:$0xff]
        %v1149 = vld [vmem:[#allocation8 + $0x78] sm:$0xff]
        %v1150 = vld [vmem:[#allocation8 + $0x80] sm:$0xff]
        %v1151 = vld [vmem:[#allocation8 + $0x88] sm:$0xff]
        %v1152 = vld [vmem:[#allocation8 + $0x90] sm:$0xff]
        %v1153 = vld [vmem:[#allocation8 + $0x98] sm:$0xff]
        %v1154 = vld [vmem:[#allocation8 + $0xa0] sm:$0xff]
        %v1155 = vld [vmem:[#allocation8 + $0xa8] sm:$0xff]
        %v1156 = vld [vmem:[#allocation8 + $0xb0] sm:$0xff]
        %v1157 = vld [vmem:[#allocation8 + $0xb8] sm:$0xff]
        %v1158 = vld [vmem:[#allocation8 + $0xc0] sm:$0xff]
        %v1159 = vld [vmem:[#allocation8 + $0xc8] sm:$0xff]
        %v1160 = vld [vmem:[#allocation8 + $0xd0] sm:$0xff]
        %v1161 = vld [vmem:[#allocation8 + $0xd8] sm:$0xff]
        %v1162 = vld [vmem:[#allocation8 + $0xe0] sm:$0xff]
        %v1163 = vld [vmem:[#allocation8 + $0xe8] sm:$0xff]
        %v1164 = vld [vmem:[#allocation8 + $0xf0] sm:$0xff]
        %v1165 = vld [vmem:[#allocation8 + $0xf8] sm:$0xff]
        %v1166 = vld [vmem:[%s6] sm:$0x3]
        %v1168 = vlaneseq
        %v1169 = vshrl.u32 %v1168, 7
        %v1170 = vsub.s32 0, %v1169
        %v1171 = vrot.slane %v1166, %v1170
        %v1172 = vlaneseq
        %v1173 = vshrl.u32 %v1172, 7
        %v1174 = vsub.s32 1, %v1173
        %v1175 = vrot.slane %v1166, %v1174
        %v1210 = vunpack.c.l.b16 %v1134
        %v1211 = vunpack.c.h.b16 %v1134
        %v1212 = vunpack.c.l.b16 %v1135
        %v1213 = vunpack.c.h.b16 %v1135
        %v1214 = vunpack.c.l.b16 %v1136
        %v1215 = vunpack.c.h.b16 %v1136
        %v1216 = vunpack.c.l.b16 %v1137
        %v1217 = vunpack.c.h.b16 %v1137
        %v1218 = vunpack.c.l.b16 %v1138
        %v1219 = vunpack.c.h.b16 %v1138
        %v1220 = vunpack.c.l.b16 %v1139
        %v1221 = vunpack.c.h.b16 %v1139
        %v1222 = vunpack.c.l.b16 %v1140
        %v1223 = vunpack.c.h.b16 %v1140
        %v1224 = vunpack.c.l.b16 %v1141
        %v1225 = vunpack.c.h.b16 %v1141
        %v1226 = vunpack.c.l.b16 %v1142
        %v1227 = vunpack.c.h.b16 %v1142
        %v1228 = vunpack.c.l.b16 %v1143
        %v1229 = vunpack.c.h.b16 %v1143
        %v1230 = vunpack.c.l.b16 %v1144
        %v1231 = vunpack.c.h.b16 %v1144
        %v1232 = vunpack.c.l.b16 %v1145
        %v1233 = vunpack.c.h.b16 %v1145
        %v1234 = vunpack.c.l.b16 %v1146
        %v1235 = vunpack.c.h.b16 %v1146
        %v1236 = vunpack.c.l.b16 %v1147
        %v1237 = vunpack.c.h.b16 %v1147
        %v1238 = vunpack.c.l.b16 %v1148
        %v1239 = vunpack.c.h.b16 %v1148
        %v1240 = vunpack.c.l.b16 %v1149
        %v1241 = vunpack.c.h.b16 %v1149
        %v1242 = vunpack.c.l.b16 %v1150
        %v1243 = vunpack.c.h.b16 %v1150
        %v1244 = vunpack.c.l.b16 %v1151
        %v1245 = vunpack.c.h.b16 %v1151
        %v1246 = vunpack.c.l.b16 %v1152
        %v1247 = vunpack.c.h.b16 %v1152
        %v1248 = vunpack.c.l.b16 %v1153
        %v1249 = vunpack.c.h.b16 %v1153
        %v1250 = vunpack.c.l.b16 %v1154
        %v1251 = vunpack.c.h.b16 %v1154
        %v1252 = vunpack.c.l.b16 %v1155
        %v1253 = vunpack.c.h.b16 %v1155
        %v1254 = vunpack.c.l.b16 %v1156
        %v1255 = vunpack.c.h.b16 %v1156
        %v1256 = vunpack.c.l.b16 %v1157
        %v1257 = vunpack.c.h.b16 %v1157
        %v1258 = vunpack.c.l.b16 %v1158
        %v1259 = vunpack.c.h.b16 %v1158
        %v1260 = vunpack.c.l.b16 %v1159
        %v1261 = vunpack.c.h.b16 %v1159
        %v1262 = vunpack.c.l.b16 %v1160
        %v1263 = vunpack.c.h.b16 %v1160
        %v1264 = vunpack.c.l.b16 %v1161
        %v1265 = vunpack.c.h.b16 %v1161
        %v1266 = vunpack.c.l.b16 %v1162
        %v1267 = vunpack.c.h.b16 %v1162
        %v1268 = vunpack.c.l.b16 %v1163
        %v1269 = vunpack.c.h.b16 %v1163
        %v1270 = vunpack.c.l.b16 %v1164
        %v1271 = vunpack.c.h.b16 %v1164
        %v1272 = vunpack.c.l.b16 %v1165
        %v1273 = vunpack.c.h.b16 %v1165
        %v1274 = vpack.c.b16 %v1212, %v1210
        %v1275 = vpack.c.b16 %v1213, %v1211
        %v1276 = vpack.c.b16 %v1216, %v1214
        %v1277 = vpack.c.b16 %v1217, %v1215
        %v1278 = vpack.c.b16 %v1220, %v1218
        %v1279 = vpack.c.b16 %v1221, %v1219
        %v1280 = vpack.c.b16 %v1224, %v1222
        %v1281 = vpack.c.b16 %v1225, %v1223
        %v1282 = vpack.c.b16 %v1228, %v1226
        %v1283 = vpack.c.b16 %v1229, %v1227
        %v1284 = vpack.c.b16 %v1232, %v1230
        %v1285 = vpack.c.b16 %v1233, %v1231
        %v1286 = vpack.c.b16 %v1236, %v1234
        %v1287 = vpack.c.b16 %v1237, %v1235
        %v1288 = vpack.c.b16 %v1240, %v1238
        %v1289 = vpack.c.b16 %v1241, %v1239
        %v1290 = vpack.c.b16 %v1244, %v1242
        %v1291 = vpack.c.b16 %v1245, %v1243
        %v1292 = vpack.c.b16 %v1248, %v1246
        %v1293 = vpack.c.b16 %v1249, %v1247
        %v1294 = vpack.c.b16 %v1252, %v1250
        %v1295 = vpack.c.b16 %v1253, %v1251
        %v1296 = vpack.c.b16 %v1256, %v1254
        %v1297 = vpack.c.b16 %v1257, %v1255
        %v1298 = vpack.c.b16 %v1260, %v1258
        %v1299 = vpack.c.b16 %v1261, %v1259
        %v1300 = vpack.c.b16 %v1264, %v1262
        %v1301 = vpack.c.b16 %v1265, %v1263
        %v1302 = vpack.c.b16 %v1268, %v1266
        %v1303 = vpack.c.b16 %v1269, %v1267
        %v1304 = vpack.c.b16 %v1272, %v1270
        %v1305 = vpack.c.b16 %v1273, %v1271
        %1338 = vmatprep.subr.bf16.mxu0 %v1275
        %1339 = vmatpush1.bf16.msra.mxu0 %v1274
        %1340 = vmatprep.subr.bf16.mxu0 %v1277
        %1341 = vmatpush1.bf16.msra.mxu0 %v1276
        %1342 = vmatprep.subr.bf16.mxu0 %v1279
        %1343 = vmatpush1.bf16.msra.mxu0 %v1278
        %1344 = vmatprep.subr.bf16.mxu0 %v1281
        %1345 = vmatpush1.bf16.msra.mxu0 %v1280
        %1346 = vmatprep.subr.bf16.mxu0 %v1283
        %1347 = vmatpush1.bf16.msra.mxu0 %v1282
        %1348 = vmatprep.subr.bf16.mxu0 %v1285
        %1349 = vmatpush1.bf16.msra.mxu0 %v1284
        %1350 = vmatprep.subr.bf16.mxu0 %v1287
        %1351 = vmatpush1.bf16.msra.mxu0 %v1286
        %1352 = vmatprep.subr.bf16.mxu0 %v1289
        %1353 = vmatpush1.bf16.msra.mxu0 %v1288
        %1354 = vmatprep.subr.bf16.mxu0 %v1291
        %1355 = vmatpush1.bf16.msra.mxu0 %v1290
        %1356 = vmatprep.subr.bf16.mxu0 %v1293
        %1357 = vmatpush1.bf16.msra.mxu0 %v1292
        %1358 = vmatprep.subr.bf16.mxu0 %v1295
        %1359 = vmatpush1.bf16.msra.mxu0 %v1294
        %1360 = vmatprep.subr.bf16.mxu0 %v1297
        %1361 = vmatpush1.bf16.msra.mxu0 %v1296
        %1362 = vmatprep.subr.bf16.mxu0 %v1299
        %1363 = vmatpush1.bf16.msra.mxu0 %v1298
        %1364 = vmatprep.subr.bf16.mxu0 %v1301
        %1365 = vmatpush1.bf16.msra.mxu0 %v1300
        %1366 = vmatprep.subr.bf16.mxu0 %v1303
        %1367 = vmatpush1.bf16.msra.mxu0 %v1302
        %1368 = vmatprep.subr.bf16.mxu0 %v1305
        %1369 = vmatpush1.bf16.msra.mxu0 %v1304
        %1370 = vmatprep.mubr.bf16.mxu0 %v1133
        %1371 = vmatmul.mubr.bf16.gmra.mrb[0].mxu0 %v1132
        %v1372 = vpop.f32.mrb[0].mxu0
        %v1373 = vadd.f32 %v1171, %v1372
        %v1374 = vpop.f32.mrb[0].mxu0
        %v1375 = vadd.f32 %v1175, %v1374
        %v1376 = vpop.f32.mrb[0].mxu0
        %v1377 = vadd.f32 %v1171, %v1376
        %v1378 = vpop.f32.mrb[0].mxu0
        %v1379 = vadd.f32 %v1175, %v1378
        %1380 = vdwg.mxu0
        %v1381 = vmax.f32 %v1373, 0.0
        %v1382 = vmax.f32 %v1375, 0.0
        %v1383 = vmax.f32 %v1377, 0.0
        %v1384 = vmax.f32 %v1379, 0.0
        %v1385 = vpack.c.bf16 %v1383, %v1381
        %v1386 = vpack.c.bf16 %v1384, %v1382
        %v1387 = vld [vmem:[#allocation10] sm:$0xff]
        %v1388 = vld [vmem:[#allocation10 + $0x8] sm:$0xff]
        %v1389 = vld [vmem:[#allocation10 + $0x10] sm:$0xff]
        %v1390 = vld [vmem:[#allocation10 + $0x18] sm:$0xff]
        %v1391 = vld [vmem:[#allocation10 + $0x20] sm:$0xff]
        %v1392 = vld [vmem:[#allocation10 + $0x28] sm:$0xff]
        %v1393 = vld [vmem:[#allocation10 + $0x30] sm:$0xff]
        %v1394 = vld [vmem:[#allocation10 + $0x38] sm:$0xff]
        %v1395 = vld [vmem:[#allocation10 + $0x40] sm:$0xff]
        %v1396 = vld [vmem:[#allocation10 + $0x48] sm:$0xff]
        %v1397 = vld [vmem:[#allocation10 + $0x50] sm:$0xff]
        %v1398 = vld [vmem:[#allocation10 + $0x58] sm:$0xff]
        %v1399 = vld [vmem:[#allocation10 + $0x60] sm:$0xff]
        %v1400 = vld [vmem:[#allocation10 + $0x68] sm:$0xff]
        %v1401 = vld [vmem:[#allocation10 + $0x70] sm:$0xff]
        %v1402 = vld [vmem:[#allocation10 + $0x78] sm:$0xff]
        %v1403 = vld [vmem:[#allocation10 + $0x80] sm:$0xff]
        %v1404 = vld [vmem:[#allocation10 + $0x88] sm:$0xff]
        %v1405 = vld [vmem:[#allocation10 + $0x90] sm:$0xff]
        %v1406 = vld [vmem:[#allocation10 + $0x98] sm:$0xff]
        %v1407 = vld [vmem:[#allocation10 + $0xa0] sm:$0xff]
        %v1408 = vld [vmem:[#allocation10 + $0xa8] sm:$0xff]
        %v1409 = vld [vmem:[#allocation10 + $0xb0] sm:$0xff]
        %v1410 = vld [vmem:[#allocation10 + $0xb8] sm:$0xff]
        %v1411 = vld [vmem:[#allocation10 + $0xc0] sm:$0xff]
        %v1412 = vld [vmem:[#allocation10 + $0xc8] sm:$0xff]
        %v1413 = vld [vmem:[#allocation10 + $0xd0] sm:$0xff]
        %v1414 = vld [vmem:[#allocation10 + $0xd8] sm:$0xff]
        %v1415 = vld [vmem:[#allocation10 + $0xe0] sm:$0xff]
        %v1416 = vld [vmem:[#allocation10 + $0xe8] sm:$0xff]
        %v1417 = vld [vmem:[#allocation10 + $0xf0] sm:$0xff]
        %v1418 = vld [vmem:[#allocation10 + $0xf8] sm:$0xff]
        %v1419 = vld [vmem:[%s8] sm:$0x3]
        %v1421 = vlaneseq
        %v1422 = vshrl.u32 %v1421, 7
        %v1423 = vsub.s32 0, %v1422
        %v1424 = vrot.slane %v1419, %v1423
        %v1425 = vlaneseq
        %v1426 = vshrl.u32 %v1425, 7
        %v1427 = vsub.s32 1, %v1426
        %v1428 = vrot.slane %v1419, %v1427
        %v1463 = vunpack.c.l.b16 %v1387
        %v1464 = vunpack.c.h.b16 %v1387
        %v1465 = vunpack.c.l.b16 %v1388
        %v1466 = vunpack.c.h.b16 %v1388
        %v1467 = vunpack.c.l.b16 %v1389
        %v1468 = vunpack.c.h.b16 %v1389
        %v1469 = vunpack.c.l.b16 %v1390
        %v1470 = vunpack.c.h.b16 %v1390
        %v1471 = vunpack.c.l.b16 %v1391
        %v1472 = vunpack.c.h.b16 %v1391
        %v1473 = vunpack.c.l.b16 %v1392
        %v1474 = vunpack.c.h.b16 %v1392
        %v1475 = vunpack.c.l.b16 %v1393
        %v1476 = vunpack.c.h.b16 %v1393
        %v1477 = vunpack.c.l.b16 %v1394
        %v1478 = vunpack.c.h.b16 %v1394
        %v1479 = vunpack.c.l.b16 %v1395
        %v1480 = vunpack.c.h.b16 %v1395
        %v1481 = vunpack.c.l.b16 %v1396
        %v1482 = vunpack.c.h.b16 %v1396
        %v1483 = vunpack.c.l.b16 %v1397
        %v1484 = vunpack.c.h.b16 %v1397
        %v1485 = vunpack.c.l.b16 %v1398
        %v1486 = vunpack.c.h.b16 %v1398
        %v1487 = vunpack.c.l.b16 %v1399
        %v1488 = vunpack.c.h.b16 %v1399
        %v1489 = vunpack.c.l.b16 %v1400
        %v1490 = vunpack.c.h.b16 %v1400
        %v1491 = vunpack.c.l.b16 %v1401
        %v1492 = vunpack.c.h.b16 %v1401
        %v1493 = vunpack.c.l.b16 %v1402
        %v1494 = vunpack.c.h.b16 %v1402
        %v1495 = vunpack.c.l.b16 %v1403
        %v1496 = vunpack.c.h.b16 %v1403
        %v1497 = vunpack.c.l.b16 %v1404
        %v1498 = vunpack.c.h.b16 %v1404
        %v1499 = vunpack.c.l.b16 %v1405
        %v1500 = vunpack.c.h.b16 %v1405
        %v1501 = vunpack.c.l.b16 %v1406
        %v1502 = vunpack.c.h.b16 %v1406
        %v1503 = vunpack.c.l.b16 %v1407
        %v1504 = vunpack.c.h.b16 %v1407
        %v1505 = vunpack.c.l.b16 %v1408
        %v1506 = vunpack.c.h.b16 %v1408
        %v1507 = vunpack.c.l.b16 %v1409
        %v1508 = vunpack.c.h.b16 %v1409
        %v1509 = vunpack.c.l.b16 %v1410
        %v1510 = vunpack.c.h.b16 %v1410
        %v1511 = vunpack.c.l.b16 %v1411
        %v1512 = vunpack.c.h.b16 %v1411
        %v1513 = vunpack.c.l.b16 %v1412
        %v1514 = vunpack.c.h.b16 %v1412
        %v1515 = vunpack.c.l.b16 %v1413
        %v1516 = vunpack.c.h.b16 %v1413
        %v1517 = vunpack.c.l.b16 %v1414
        %v1518 = vunpack.c.h.b16 %v1414
        %v1519 = vunpack.c.l.b16 %v1415
        %v1520 = vunpack.c.h.b16 %v1415
        %v1521 = vunpack.c.l.b16 %v1416
        %v1522 = vunpack.c.h.b16 %v1416
        %v1523 = vunpack.c.l.b16 %v1417
        %v1524 = vunpack.c.h.b16 %v1417
        %v1525 = vunpack.c.l.b16 %v1418
        %v1526 = vunpack.c.h.b16 %v1418
        %v1527 = vpack.c.b16 %v1465, %v1463
        %v1528 = vpack.c.b16 %v1466, %v1464
        %v1529 = vpack.c.b16 %v1469, %v1467
        %v1530 = vpack.c.b16 %v1470, %v1468
        %v1531 = vpack.c.b16 %v1473, %v1471
        %v1532 = vpack.c.b16 %v1474, %v1472
        %v1533 = vpack.c.b16 %v1477, %v1475
        %v1534 = vpack.c.b16 %v1478, %v1476
        %v1535 = vpack.c.b16 %v1481, %v1479
        %v1536 = vpack.c.b16 %v1482, %v1480
        %v1537 = vpack.c.b16 %v1485, %v1483
        %v1538 = vpack.c.b16 %v1486, %v1484
        %v1539 = vpack.c.b16 %v1489, %v1487
        %v1540 = vpack.c.b16 %v1490, %v1488
        %v1541 = vpack.c.b16 %v1493, %v1491
        %v1542 = vpack.c.b16 %v1494, %v1492
        %v1543 = vpack.c.b16 %v1497, %v1495
        %v1544 = vpack.c.b16 %v1498, %v1496
        %v1545 = vpack.c.b16 %v1501, %v1499
        %v1546 = vpack.c.b16 %v1502, %v1500
        %v1547 = vpack.c.b16 %v1505, %v1503
        %v1548 = vpack.c.b16 %v1506, %v1504
        %v1549 = vpack.c.b16 %v1509, %v1507
        %v1550 = vpack.c.b16 %v1510, %v1508
        %v1551 = vpack.c.b16 %v1513, %v1511
        %v1552 = vpack.c.b16 %v1514, %v1512
        %v1553 = vpack.c.b16 %v1517, %v1515
        %v1554 = vpack.c.b16 %v1518, %v1516
        %v1555 = vpack.c.b16 %v1521, %v1519
        %v1556 = vpack.c.b16 %v1522, %v1520
        %v1557 = vpack.c.b16 %v1525, %v1523
        %v1558 = vpack.c.b16 %v1526, %v1524
        %1591 = vmatprep.subr.bf16.mxu0 %v1528
        %1592 = vmatpush1.bf16.msra.mxu0 %v1527
        %1593 = vmatprep.subr.bf16.mxu0 %v1530
        %1594 = vmatpush1.bf16.msra.mxu0 %v1529
        %1595 = vmatprep.subr.bf16.mxu0 %v1532
        %1596 = vmatpush1.bf16.msra.mxu0 %v1531
        %1597 = vmatprep.subr.bf16.mxu0 %v1534
        %1598 = vmatpush1.bf16.msra.mxu0 %v1533
        %1599 = vmatprep.subr.bf16.mxu0 %v1536
        %1600 = vmatpush1.bf16.msra.mxu0 %v1535
        %1601 = vmatprep.subr.bf16.mxu0 %v1538
        %1602 = vmatpush1.bf16.msra.mxu0 %v1537
        %1603 = vmatprep.subr.bf16.mxu0 %v1540
        %1604 = vmatpush1.bf16.msra.mxu0 %v1539
        %1605 = vmatprep.subr.bf16.mxu0 %v1542
        %1606 = vmatpush1.bf16.msra.mxu0 %v1541
        %1607 = vmatprep.subr.bf16.mxu0 %v1544
        %1608 = vmatpush1.bf16.msra.mxu0 %v1543
        %1609 = vmatprep.subr.bf16.mxu0 %v1546
        %1610 = vmatpush1.bf16.msra.mxu0 %v1545
        %1611 = vmatprep.subr.bf16.mxu0 %v1548
        %1612 = vmatpush1.bf16.msra.mxu0 %v1547
        %1613 = vmatprep.subr.bf16.mxu0 %v1550
        %1614 = vmatpush1.bf16.msra.mxu0 %v1549
        %1615 = vmatprep.subr.bf16.mxu0 %v1552
        %1616 = vmatpush1.bf16.msra.mxu0 %v1551
        %1617 = vmatprep.subr.bf16.mxu0 %v1554
        %1618 = vmatpush1.bf16.msra.mxu0 %v1553
        %1619 = vmatprep.subr.bf16.mxu0 %v1556
        %1620 = vmatpush1.bf16.msra.mxu0 %v1555
        %1621 = vmatprep.subr.bf16.mxu0 %v1558
        %1622 = vmatpush1.bf16.msra.mxu0 %v1557
        %1623 = vmatprep.mubr.bf16.mxu0 %v1386
        %1624 = vmatmul.mubr.bf16.gmra.mrb[0].mxu0 %v1385
        %v1625 = vpop.f32.mrb[0].mxu0
        %v1626 = vadd.f32 %v1424, %v1625
        %v1627 = vpop.f32.mrb[0].mxu0
        %v1628 = vadd.f32 %v1428, %v1627
        %v1629 = vpop.f32.mrb[0].mxu0
        %v1630 = vadd.f32 %v1424, %v1629
        %v1631 = vpop.f32.mrb[0].mxu0
        %v1632 = vadd.f32 %v1428, %v1631
        %1633 = vdwg.mxu0
        %v1634 = vmax.f32 %v1626, 0.0
        %v1635 = vmax.f32 %v1628, 0.0
        %v1636 = vmax.f32 %v1630, 0.0
        %v1637 = vmax.f32 %v1632, 0.0
        %v1638 = vld [vmem:[%s9] sm:$0x3]
        %v1640 = vlaneseq
        %v1641 = vshrl.u32 %v1640, 7
        %v1642 = vsub.s32 0, %v1641
        %v1643 = vrot.slane %v1638, %v1642
        %v1644 = vlaneseq
        %v1645 = vshrl.u32 %v1644, 7
        %v1646 = vsub.s32 1, %v1645
        %v1647 = vrot.slane %v1638, %v1646
        %v1650 = vmul.f32 %v1634, %v1643
        %v1651 = vmul.f32 %v1635, %v1647
        %v1652 = vmul.f32 %v1636, %v1643
        %v1653 = vmul.f32 %v1637, %v1647
        %v1654 = vadd.f32 %v1650, %v1651
        %1655 = vadd.xlane.f32.xlu0 %v1654
        %v1656 = vpop.xlane.xlu0 %1655
        %v1657 = vadd.f32 %v1652, %v1653
        %1658 = vadd.xlane.f32.xlu0 %v1657
        %v1659 = vpop.xlane.xlu0 %1658
        %s1660 = sld [smem:[#allocation2]]
        %v1661 = vstv %s1660
        %v1662 = vadd.f32 %v1656, %v1661
        %v1663 = vadd.f32 %v1659, %v1661
        %vm1664 = vcmask 7168
        %1665 = vst.msk [vmem:[%s466] sm:$0xff] %vm1664, %v1662
        %1666 = vst.msk [vmem:[%s466 + $0x8] sm:$0xff] %vm1664, %v1663
        %s1667 = smul.u32 2, %s28
        %p1668 = scmp.lt.s32.totalorder %s1667, 3
        %s1669 = scalar_select %p1668, %s1667, 3
        %s1670 = smul.addr %s1669, 8
        %s1671 = scalar_lea.vmem %s11, %s1670
        // Predicated region
        $region85: #{tpu_custom_call.1} parent=63 // pred_check
          %p1672 = pneg %p282
        $region86: #{tpu_custom_call.1} parent=63 // pred_check_branch
          %1674 = sbr.rel (%p1672) target = $region88
        $region87: #{tpu_custom_call.1} parent=63 // pred_region
          %s1675 = smul.u32 2, %s28
        $region88: #{tpu_custom_call.1} parent=63 // pred_fallthru
          _
      $region64: #{tpu_custom_call.1} parent=5 // pred_fallthru
        _
      %p1676 = scmp.le.s32.totalorder 2, %s23
      // Predicated region
      $region89: #{tpu_custom_call.1} parent=5 // pred_check
        %p1677 = pneg %p1676
      $region90: #{tpu_custom_call.1} parent=5 // pred_check_branch
        %1679 = sbr.rel (%p1677) target = $region92
      $region91: #{tpu_custom_call.1} parent=5 // pred_region
        %s1680 = ssub.s32 %s23, 2
        // Predicated region
        $region93: #{tpu_custom_call.1} parent=91 // pred_check
          %p1681 = pneg %p288
        $region94: #{tpu_custom_call.1} parent=91 // pred_check_branch
          %1683 = sbr.rel (%p1681) target = $region96
        $region95: #{tpu_custom_call.1} parent=91 // pred_region
          %s1684 = smul.u32 2, %s29
          %p1685 = scmp.lt.s32.totalorder %s1684, 3
          %s1686 = scalar_select %p1685, %s1684, 3
          %s1687 = smul.addr %s1686, 8
          %s1688 = scalar_lea.vmem %s11, %s1687
        $region96: #{tpu_custom_call.1} parent=91 // pred_fallthru
          _
      $region92: #{tpu_custom_call.1} parent=5 // pred_fallthru
        _
    $region6: #{tpu_custom_call.1} parent=1 // loop_footer
      %s27 = sadd.s32 1, %s23
    $region7: #{tpu_custom_call.1} parent=1 // loop_footer_branch
      %22 = sbr.rel target = $region3
    $region8: #{tpu_custom_call.1} parent=1 // loop_exit
      _
    %1689 = vsyncpa [#allocation4], 1
    %s1690 = scalar_lea.sflag [#allocation4], 1
    %1691 = vsyncpa %s1690, 1
    %1692 = vsyncpa [#allocation6], 1
    %1693 = vsyncpa [#allocation9], 1

</llo_original>
